<compile_context>
chip_gen: v7x
topology: tpu7x:2x2x1
jax: 0.10.0
libtpu: 0.0.40
codegen_flags: <defaults>
</compile_context>

<pallas_src>
import functools

import jax
import jax.numpy as jnp
import numpy as np
from jax.experimental import pallas as pl
from jax.experimental.pallas import tpu as pltpu


def _round_up(x, m):
    return (x + m - 1) // m * m


def _pick_tile(padded, granule, target):
    """Largest multiple of `granule` that divides `padded` and is <= target."""
    best = granule
    k = padded // granule
    for d in range(1, k + 1):
        if k % d == 0 and d * granule <= target:
            best = d * granule
    return best


# ---------------------------------------------------------------------------
# Pallas kernel: one (gene-tile, batch-tile) block of the fused encoder.
# ---------------------------------------------------------------------------
def _ae_encoder_kernel(x_ref, w1_ref, b1_ref, w2_ref, bz_ref, o_ref, *,
                       feat_per_gene, width_multiplier):
    """
    x_ref : (f, tm, Gb)  bf16  input features, gene axis on lanes
    w1_ref: (w, f, Gb)   bf16  packed layer-1 diagonal blocks
    b1_ref: (w, Gb)      f32   layer-1 bias (packed per gene)
    w2_ref: (w, Gb)      f32   layer-2 weights with BN1/BN2 scales folded in
    bz_ref: (1, Gb)      f32   folded output bias (t1-path, b2, BN2 shift)
    o_ref : (tm, Gb)     f32   output embedding tile
    """
    w1 = w1_ref[...].astype(jnp.float32)        # (w, f, Gb)  -- small
    b1 = b1_ref[...]                            # (w, Gb)
    w2 = w2_ref[...]                            # (w, Gb)

    # Hidden pre-activations for the `width_multiplier` nodes of each gene.
    # Stream x one feature-slice at a time (converted bf16->f32 once per slice).
    h = [b1[j:j + 1, :] for j in range(width_multiplier)]        # each (1, Gb)
    for fi in range(feat_per_gene):                              # small, static
        xv = x_ref[fi].astype(jnp.float32)                       # (tm, Gb)
        for j in range(width_multiplier):                        # small, static
            h[j] = h[j] + xv * w1[j, fi:fi + 1, :]

    # ReLU, then the second (1/n_genes-dense) layer as a multiply-reduce over
    # the per-gene hidden nodes.  BN1/BN2/bias already folded into w2 / bz.
    z = bz_ref[...]                                              # (1, Gb)
    for j in range(width_multiplier):
        z = z + jnp.maximum(h[j], 0.0) * w2[j:j + 1, :]
    o_ref[...] = z                                               # (tm, Gb)


# ---------------------------------------------------------------------------
# Wrapper: layout packing, padding, tiled pallas_call.
# ---------------------------------------------------------------------------
def pack_params(w1m, b1, s1, t1, w2m, b2, s2, t2,
                n_genes, feat_per_gene, width_multiplier):
    """Extract the per-gene diagonal blocks and fold eval-mode BN + biases."""
    G, f, w = n_genes, feat_per_gene, width_multiplier
    w1m = np.asarray(w1m)                     # (G*w, G*f) masked dense
    w2m = np.asarray(w2m)                     # (G,   G*w) masked dense
    b1 = np.asarray(b1).reshape(G, w)
    s1 = np.asarray(s1).reshape(G, w)
    t1 = np.asarray(t1).reshape(G, w)
    b2 = np.asarray(b2); s2 = np.asarray(s2); t2 = np.asarray(t2)

    # Diagonal (per-gene) blocks of the structurally sparse weights.
    w1_blocks = w1m.reshape(G, w, G, f)[np.arange(G), :, np.arange(G), :]  # (G, w, f)
    w2_blocks = w2m.reshape(G, G, w)[np.arange(G), np.arange(G), :]        # (G, w)

    # Exact BN fold:  z = relu(x W1 + b1) @ (s1*W2*s2) + ((t1*W2).sum + b2)*s2 + t2
    w2f = (s1 * w2_blocks) * s2[:, None]                                   # (G, w)
    bz = ((t1 * w2_blocks).sum(axis=1) + b2) * s2 + t2                     # (G,)

    return {
        "w1p": jnp.asarray(w1_blocks.transpose(1, 2, 0), jnp.bfloat16),    # (w, f, G)
        "b1p": jnp.asarray(b1.T, jnp.float32),                             # (w, G)
        "w2f": jnp.asarray(w2f.T, jnp.float32),                            # (w, G)
        "bz":  jnp.asarray(bz[None, :], jnp.float32),                      # (1, G)
    }


def ae_encoder_forward(x, packed, n_genes, feat_per_gene, width_multiplier,
                       *, batch_tile_target=128, gene_tile_target=512):
    """Fused AEEncoder forward (eval mode) via a single tiled pallas_call."""
    B, D_in = x.shape
    G, f, w = n_genes, feat_per_gene, width_multiplier
    assert D_in == G * f

    # Tile sizes: lane (gene) tiles are multiples of 128, sublane (batch) tiles
    # multiples of 8.  Targets fit comfortably in v7x's 64 MiB VMEM (blocks are
    # ~1 MiB bf16 even at the largest targets), v5e/v6e get the same tiles.
    b_pad = _round_up(max(B, 8), 8)
    g_pad = _round_up(G, 128)
    tm = _pick_tile(b_pad, 8, batch_tile_target)
    gb = _pick_tile(g_pad, 128, gene_tile_target)

    # Lane-major input layout: x[b, g*f + fi] -> x_pack[fi, b, g]  (gene on lanes)
    x_pack = jnp.transpose(x.reshape(B, G, f), (2, 0, 1))
    x_pack = jnp.pad(x_pack, ((0, 0), (0, b_pad - B), (0, g_pad - G)))
    x_pack = x_pack.astype(jnp.bfloat16)

    def pad_genes(a):
        pads = [(0, 0)] * (a.ndim - 1) + [(0, g_pad - a.shape[-1])]
        return jnp.pad(a, pads)

    w1p = pad_genes(packed["w1p"])    # (w, f, g_pad) bf16
    b1p = pad_genes(packed["b1p"])    # (w, g_pad)    f32
    w2f = pad_genes(packed["w2f"])    # (w, g_pad)    f32
    bz = pad_genes(packed["bz"])      # (1, g_pad)    f32

    # Grid: gene tiles outer, batch tiles inner -> weight blocks stay resident
    # across consecutive batch steps (index map unchanged => no re-DMA).
    grid = (g_pad // gb, b_pad // tm)

    kernel = functools.partial(_ae_encoder_kernel,
                               feat_per_gene=f, width_multiplier=w)

    nnz1 = G * f * w          # layer-1 structural nonzeros
    nnz2 = G * w              # layer-2 structural nonzeros
    cost = pl.CostEstimate(
        flops=2 * B * (nnz1 + nnz2),
        transcendentals=0,
        bytes_accessed=(x_pack.size * 2 + w1p.size * 2
                        + (b1p.size + w2f.size + bz.size) * 4
                        + b_pad * g_pad * 4),
    )

    out = pl.pallas_call(
        kernel,
        out_shape=jax.ShapeDtypeStruct((b_pad, g_pad), jnp.float32),
        grid=grid,
        in_specs=[
            pl.BlockSpec((f, tm, gb), lambda g, i: (0, i, g)),   # x
            pl.BlockSpec((w, f, gb), lambda g, i: (0, 0, g)),    # W1 blocks
            pl.BlockSpec((w, gb), lambda g, i: (0, g)),          # b1
            pl.BlockSpec((w, gb), lambda g, i: (0, g)),          # folded W2
            pl.BlockSpec((1, gb), lambda g, i: (0, g)),          # folded bias
        ],
        out_specs=pl.BlockSpec((tm, gb), lambda g, i: (i, g)),
        compiler_params=pltpu.CompilerParams(
            dimension_semantics=("parallel", "parallel"),
            vmem_limit_bytes=32 * 1024 * 1024,
        ),
        cost_estimate=cost,
    )(x_pack, w1p, b1p, w2f, bz)

    return out[:B, :G]


# ---------------------------------------------------------------------------
# Pure-JAX reference following the original dense-masked formulation.
# ---------------------------------------------------------------------------
def reference_forward(x, dense):
    hp = jax.lax.Precision.HIGHEST
    h = jnp.dot(x, dense["w1m"].T, precision=hp) + dense["b1"]
    h = jnp.maximum(h, 0.0)
    h = h * dense["s1"] + dense["t1"]
    z = jnp.dot(h, dense["w2m"].T, precision=hp) + dense["b2"]
    return z * dense["s2"] + dense["t2"]


if __name__ == "__main__":
    # Synthetic GeneGroupedIndep configuration, sized so the grid really tiles
    # (5 gene tiles x 2 batch tiles) while staying small/fast.
    n_genes = 640
    feat_per_gene = 8
    width_multiplier = 4          # nodes_per_gene
    batch = 192
    # dropout_rate = 0 at eval (identity); batch_norm=True folded in eval mode.
    # TODO(synk): training-mode Dropout / batch-statistic BatchNorm not implemented
    # (inference semantics only).

    D_in = n_genes * feat_per_gene
    H = n_genes * width_multiplier
    E = n_genes

    root = jax.random.PRNGKey(0)
    k = jax.random.split(root, 13)

    # Gene-grouped-independent connectivity masks (block-diagonal structure).
    gene_of_in = np.arange(D_in) // feat_per_gene
    gene_of_hid = np.arange(H) // width_multiplier
    mask1 = (gene_of_hid[:, None] == gene_of_in[None, :]).astype(np.float32)    # (H, D_in)
    mask2 = (np.arange(E)[:, None] == gene_of_hid[None, :]).astype(np.float32)  # (E, H)

    w1 = jax.random.normal(k[0], (H, D_in), jnp.float32) * 0.1
    b1 = jax.random.normal(k[1], (H,), jnp.float32) * 0.1
    w2 = jax.random.normal(k[2], (E, H), jnp.float32) * 0.1
    b2 = jax.random.normal(k[3], (E,), jnp.float32) * 0.1

    # BatchNorm (eval) parameters / running statistics.
    g1 = 1.0 + 0.1 * jax.random.normal(k[4], (H,), jnp.float32)
    be1 = 0.1 * jax.random.normal(k[5], (H,), jnp.float32)
    rm1 = 0.05 * jax.random.normal(k[6], (H,), jnp.float32)
    rv1 = jnp.abs(1.0 + 0.1 * jax.random.normal(k[7], (H,), jnp.float32))
    g2 = 1.0 + 0.1 * jax.random.normal(k[8], (E,), jnp.float32)
    be2 = 0.1 * jax.random.normal(k[9], (E,), jnp.float32)
    rm2 = 0.05 * jax.random.normal(k[10], (E,), jnp.float32)
    rv2 = jnp.abs(1.0 + 0.1 * jax.random.normal(k[11], (E,), jnp.float32))

    eps = 1e-5
    s1 = g1 / jnp.sqrt(rv1 + eps); t1 = be1 - rm1 * s1
    s2 = g2 / jnp.sqrt(rv2 + eps); t2 = be2 - rm2 * s2

    x = jax.random.normal(k[12], (batch, D_in), jnp.float32)

    # bf16 quantization of the two large operands, applied identically to the
    # reference path so the check is exact up to f32 accumulation order.
    x_q = x.astype(jnp.bfloat16).astype(jnp.float32)
    w1m_q = (w1 * jnp.asarray(mask1)).astype(jnp.bfloat16).astype(jnp.float32)
    w2m = w2 * jnp.asarray(mask2)

    dense = {"w1m": w1m_q, "b1": b1, "s1": s1, "t1": t1,
             "w2m": w2m, "b2": b2, "s2": s2, "t2": t2}
    packed = pack_params(w1m_q, b1, s1, t1, w2m, b2, s2, t2,
                         n_genes, feat_per_gene, width_multiplier)

    out = ae_encoder_forward(x_q, packed, n_genes, feat_per_gene, width_multiplier)
    out = jax.block_until_ready(out)

    ref = jax.block_until_ready(reference_forward(x_q, dense))
    assert out.shape == (batch, E), out.shape
    np.testing.assert_allclose(np.asarray(out), np.asarray(ref), rtol=1e-4, atol=1e-4)

    print("KERNEL_OK")
</pallas_src>

<mosaic_0001>
module attributes {stable_mosaic.version = 11 : i64} {
  func.func @_ae_encoder_kernel(%arg0: i32, %arg1: i32, %arg2: memref<8x96x128xbf16, #tpu.memory_space<vmem>>, %arg3: memref<4x8x128xbf16, #tpu.memory_space<vmem>>, %arg4: memref<4x128xf32, #tpu.memory_space<vmem>>, %arg5: memref<4x128xf32, #tpu.memory_space<vmem>>, %arg6: memref<1x128xf32, #tpu.memory_space<vmem>>, %arg7: memref<96x128xf32, #tpu.memory_space<vmem>>) attributes {dimension_semantics = [#tpu.dimension_semantics<parallel>, #tpu.dimension_semantics<parallel>], iteration_bounds = array<i64: 5, 2>, scalar_prefetch = 0 : i64, scratch_operands = 0 : i64, tpu.core_type = #tpu.core_type<tc>, window_params = [{transform_indices = @transform_0, window_bounds = array<i64: 8, 96, 128>}, {transform_indices = @transform_1, window_bounds = array<i64: 4, 8, 128>}, {transform_indices = @transform_2, window_bounds = array<i64: 4, 128>}, {transform_indices = @transform_3, window_bounds = array<i64: 4, 128>}, {transform_indices = @transform_4, window_bounds = array<i64: 1, 128>}, {transform_indices = @transform_5, window_bounds = array<i64: 96, 128>}]} {
    %c0 = arith.constant 0 : index
    %c0_0 = arith.constant 0 : index
    %c0_1 = arith.constant 0 : index
    %0 = vector.load %arg3[%c0, %c0_0, %c0_1] : memref<4x8x128xbf16, #tpu.memory_space<vmem>>, vector<4x8x128xbf16>
    %1 = arith.extf %0 : vector<4x8x128xbf16> to vector<4x8x128xf32>
    %c0_2 = arith.constant 0 : index
    %c0_3 = arith.constant 0 : index
    %2 = vector.load %arg4[%c0_2, %c0_3] : memref<4x128xf32, #tpu.memory_space<vmem>>, vector<4x128xf32>
    %c0_4 = arith.constant 0 : index
    %c0_5 = arith.constant 0 : index
    %3 = vector.load %arg5[%c0_4, %c0_5] : memref<4x128xf32, #tpu.memory_space<vmem>>, vector<4x128xf32>
    %4 = vector.extract_strided_slice %2 {offsets = [0, 0], sizes = [1, 128], strides = [1, 1]} : vector<4x128xf32> to vector<1x128xf32>
    %5 = vector.extract_strided_slice %2 {offsets = [1, 0], sizes = [1, 128], strides = [1, 1]} : vector<4x128xf32> to vector<1x128xf32>
    %6 = vector.extract_strided_slice %2 {offsets = [2, 0], sizes = [1, 128], strides = [1, 1]} : vector<4x128xf32> to vector<1x128xf32>
    %7 = vector.extract_strided_slice %2 {offsets = [3, 0], sizes = [1, 128], strides = [1, 1]} : vector<4x128xf32> to vector<1x128xf32>
    %c0_6 = arith.constant 0 : index
    %c0_7 = arith.constant 0 : index
    %c0_8 = arith.constant 0 : index
    %8 = vector.load %arg2[%c0_6, %c0_7, %c0_8] : memref<8x96x128xbf16, #tpu.memory_space<vmem>>, vector<1x96x128xbf16>
    %9 = vector.shape_cast %8 : vector<1x96x128xbf16> to vector<96x128xbf16>
    %10 = arith.extf %9 : vector<96x128xbf16> to vector<96x128xf32>
    %11 = vector.extract_strided_slice %1 {offsets = [0, 0, 0], sizes = [1, 1, 128], strides = [1, 1, 1]} : vector<4x8x128xf32> to vector<1x1x128xf32>
    %12 = vector.shape_cast %11 : vector<1x1x128xf32> to vector<1x128xf32>
    %13 = vector.broadcast %12 : vector<1x128xf32> to vector<96x128xf32>
    %14 = arith.mulf %10, %13 : vector<96x128xf32>
    %15 = vector.broadcast %4 : vector<1x128xf32> to vector<96x128xf32>
    %16 = arith.addf %15, %14 : vector<96x128xf32>
    %17 = vector.extract_strided_slice %1 {offsets = [1, 0, 0], sizes = [1, 1, 128], strides = [1, 1, 1]} : vector<4x8x128xf32> to vector<1x1x128xf32>
    %18 = vector.shape_cast %17 : vector<1x1x128xf32> to vector<1x128xf32>
    %19 = vector.broadcast %18 : vector<1x128xf32> to vector<96x128xf32>
    %20 = arith.mulf %10, %19 : vector<96x128xf32>
    %21 = vector.broadcast %5 : vector<1x128xf32> to vector<96x128xf32>
    %22 = arith.addf %21, %20 : vector<96x128xf32>
    %23 = vector.extract_strided_slice %1 {offsets = [2, 0, 0], sizes = [1, 1, 128], strides = [1, 1, 1]} : vector<4x8x128xf32> to vector<1x1x128xf32>
    %24 = vector.shape_cast %23 : vector<1x1x128xf32> to vector<1x128xf32>
    %25 = vector.broadcast %24 : vector<1x128xf32> to vector<96x128xf32>
    %26 = arith.mulf %10, %25 : vector<96x128xf32>
    %27 = vector.broadcast %6 : vector<1x128xf32> to vector<96x128xf32>
    %28 = arith.addf %27, %26 : vector<96x128xf32>
    %29 = vector.extract_strided_slice %1 {offsets = [3, 0, 0], sizes = [1, 1, 128], strides = [1, 1, 1]} : vector<4x8x128xf32> to vector<1x1x128xf32>
    %30 = vector.shape_cast %29 : vector<1x1x128xf32> to vector<1x128xf32>
    %31 = vector.broadcast %30 : vector<1x128xf32> to vector<96x128xf32>
    %32 = arith.mulf %10, %31 : vector<96x128xf32>
    %33 = vector.broadcast %7 : vector<1x128xf32> to vector<96x128xf32>
    %34 = arith.addf %33, %32 : vector<96x128xf32>
    %c1 = arith.constant 1 : index
    %c0_9 = arith.constant 0 : index
    %c0_10 = arith.constant 0 : index
    %35 = vector.load %arg2[%c1, %c0_9, %c0_10] : memref<8x96x128xbf16, #tpu.memory_space<vmem>>, vector<1x96x128xbf16>
    %36 = vector.shape_cast %35 : vector<1x96x128xbf16> to vector<96x128xbf16>
    %37 = arith.extf %36 : vector<96x128xbf16> to vector<96x128xf32>
    %38 = vector.extract_strided_slice %1 {offsets = [0, 1, 0], sizes = [1, 1, 128], strides = [1, 1, 1]} : vector<4x8x128xf32> to vector<1x1x128xf32>
    %39 = vector.shape_cast %38 : vector<1x1x128xf32> to vector<1x128xf32>
    %40 = vector.broadcast %39 : vector<1x128xf32> to vector<96x128xf32>
    %41 = arith.mulf %37, %40 : vector<96x128xf32>
    %42 = arith.addf %16, %41 : vector<96x128xf32>
    %43 = vector.extract_strided_slice %1 {offsets = [1, 1, 0], sizes = [1, 1, 128], strides = [1, 1, 1]} : vector<4x8x128xf32> to vector<1x1x128xf32>
    %44 = vector.shape_cast %43 : vector<1x1x128xf32> to vector<1x128xf32>
    %45 = vector.broadcast %44 : vector<1x128xf32> to vector<96x128xf32>
    %46 = arith.mulf %37, %45 : vector<96x128xf32>
    %47 = arith.addf %22, %46 : vector<96x128xf32>
    %48 = vector.extract_strided_slice %1 {offsets = [2, 1, 0], sizes = [1, 1, 128], strides = [1, 1, 1]} : vector<4x8x128xf32> to vector<1x1x128xf32>
    %49 = vector.shape_cast %48 : vector<1x1x128xf32> to vector<1x128xf32>
    %50 = vector.broadcast %49 : vector<1x128xf32> to vector<96x128xf32>
    %51 = arith.mulf %37, %50 : vector<96x128xf32>
    %52 = arith.addf %28, %51 : vector<96x128xf32>
    %53 = vector.extract_strided_slice %1 {offsets = [3, 1, 0], sizes = [1, 1, 128], strides = [1, 1, 1]} : vector<4x8x128xf32> to vector<1x1x128xf32>
    %54 = vector.shape_cast %53 : vector<1x1x128xf32> to vector<1x128xf32>
    %55 = vector.broadcast %54 : vector<1x128xf32> to vector<96x128xf32>
    %56 = arith.mulf %37, %55 : vector<96x128xf32>
    %57 = arith.addf %34, %56 : vector<96x128xf32>
    %c2 = arith.constant 2 : index
    %c0_11 = arith.constant 0 : index
    %c0_12 = arith.constant 0 : index
    %58 = vector.load %arg2[%c2, %c0_11, %c0_12] : memref<8x96x128xbf16, #tpu.memory_space<vmem>>, vector<1x96x128xbf16>
    %59 = vector.shape_cast %58 : vector<1x96x128xbf16> to vector<96x128xbf16>
    %60 = arith.extf %59 : vector<96x128xbf16> to vector<96x128xf32>
    %61 = vector.extract_strided_slice %1 {offsets = [0, 2, 0], sizes = [1, 1, 128], strides = [1, 1, 1]} : vector<4x8x128xf32> to vector<1x1x128xf32>
    %62 = vector.shape_cast %61 : vector<1x1x128xf32> to vector<1x128xf32>
    %63 = vector.broadcast %62 : vector<1x128xf32> to vector<96x128xf32>
    %64 = arith.mulf %60, %63 : vector<96x128xf32>
    %65 = arith.addf %42, %64 : vector<96x128xf32>
    %66 = vector.extract_strided_slice %1 {offsets = [1, 2, 0], sizes = [1, 1, 128], strides = [1, 1, 1]} : vector<4x8x128xf32> to vector<1x1x128xf32>
    %67 = vector.shape_cast %66 : vector<1x1x128xf32> to vector<1x128xf32>
    %68 = vector.broadcast %67 : vector<1x128xf32> to vector<96x128xf32>
    %69 = arith.mulf %60, %68 : vector<96x128xf32>
    %70 = arith.addf %47, %69 : vector<96x128xf32>
    %71 = vector.extract_strided_slice %1 {offsets = [2, 2, 0], sizes = [1, 1, 128], strides = [1, 1, 1]} : vector<4x8x128xf32> to vector<1x1x128xf32>
    %72 = vector.shape_cast %71 : vector<1x1x128xf32> to vector<1x128xf32>
    %73 = vector.broadcast %72 : vector<1x128xf32> to vector<96x128xf32>
    %74 = arith.mulf %60, %73 : vector<96x128xf32>
    %75 = arith.addf %52, %74 : vector<96x128xf32>
    %76 = vector.extract_strided_slice %1 {offsets = [3, 2, 0], sizes = [1, 1, 128], strides = [1, 1, 1]} : vector<4x8x128xf32> to vector<1x1x128xf32>
    %77 = vector.shape_cast %76 : vector<1x1x128xf32> to vector<1x128xf32>
    %78 = vector.broadcast %77 : vector<1x128xf32> to vector<96x128xf32>
    %79 = arith.mulf %60, %78 : vector<96x128xf32>
    %80 = arith.addf %57, %79 : vector<96x128xf32>
    %c3 = arith.constant 3 : index
    %c0_13 = arith.constant 0 : index
    %c0_14 = arith.constant 0 : index
    %81 = vector.load %arg2[%c3, %c0_13, %c0_14] : memref<8x96x128xbf16, #tpu.memory_space<vmem>>, vector<1x96x128xbf16>
    %82 = vector.shape_cast %81 : vector<1x96x128xbf16> to vector<96x128xbf16>
    %83 = arith.extf %82 : vector<96x128xbf16> to vector<96x128xf32>
    %84 = vector.extract_strided_slice %1 {offsets = [0, 3, 0], sizes = [1, 1, 128], strides = [1, 1, 1]} : vector<4x8x128xf32> to vector<1x1x128xf32>
    %85 = vector.shape_cast %84 : vector<1x1x128xf32> to vector<1x128xf32>
    %86 = vector.broadcast %85 : vector<1x128xf32> to vector<96x128xf32>
    %87 = arith.mulf %83, %86 : vector<96x128xf32>
    %88 = arith.addf %65, %87 : vector<96x128xf32>
    %89 = vector.extract_strided_slice %1 {offsets = [1, 3, 0], sizes = [1, 1, 128], strides = [1, 1, 1]} : vector<4x8x128xf32> to vector<1x1x128xf32>
    %90 = vector.shape_cast %89 : vector<1x1x128xf32> to vector<1x128xf32>
    %91 = vector.broadcast %90 : vector<1x128xf32> to vector<96x128xf32>
    %92 = arith.mulf %83, %91 : vector<96x128xf32>
    %93 = arith.addf %70, %92 : vector<96x128xf32>
    %94 = vector.extract_strided_slice %1 {offsets = [2, 3, 0], sizes = [1, 1, 128], strides = [1, 1, 1]} : vector<4x8x128xf32> to vector<1x1x128xf32>
    %95 = vector.shape_cast %94 : vector<1x1x128xf32> to vector<1x128xf32>
    %96 = vector.broadcast %95 : vector<1x128xf32> to vector<96x128xf32>
    %97 = arith.mulf %83, %96 : vector<96x128xf32>
    %98 = arith.addf %75, %97 : vector<96x128xf32>
    %99 = vector.extract_strided_slice %1 {offsets = [3, 3, 0], sizes = [1, 1, 128], strides = [1, 1, 1]} : vector<4x8x128xf32> to vector<1x1x128xf32>
    %100 = vector.shape_cast %99 : vector<1x1x128xf32> to vector<1x128xf32>
    %101 = vector.broadcast %100 : vector<1x128xf32> to vector<96x128xf32>
    %102 = arith.mulf %83, %101 : vector<96x128xf32>
    %103 = arith.addf %80, %102 : vector<96x128xf32>
    %c4 = arith.constant 4 : index
    %c0_15 = arith.constant 0 : index
    %c0_16 = arith.constant 0 : index
    %104 = vector.load %arg2[%c4, %c0_15, %c0_16] : memref<8x96x128xbf16, #tpu.memory_space<vmem>>, vector<1x96x128xbf16>
    %105 = vector.shape_cast %104 : vector<1x96x128xbf16> to vector<96x128xbf16>
    %106 = arith.extf %105 : vector<96x128xbf16> to vector<96x128xf32>
    %107 = vector.extract_strided_slice %1 {offsets = [0, 4, 0], sizes = [1, 1, 128], strides = [1, 1, 1]} : vector<4x8x128xf32> to vector<1x1x128xf32>
    %108 = vector.shape_cast %107 : vector<1x1x128xf32> to vector<1x128xf32>
    %109 = vector.broadcast %108 : vector<1x128xf32> to vector<96x128xf32>
    %110 = arith.mulf %106, %109 : vector<96x128xf32>
    %111 = arith.addf %88, %110 : vector<96x128xf32>
    %112 = vector.extract_strided_slice %1 {offsets = [1, 4, 0], sizes = [1, 1, 128], strides = [1, 1, 1]} : vector<4x8x128xf32> to vector<1x1x128xf32>
    %113 = vector.shape_cast %112 : vector<1x1x128xf32> to vector<1x128xf32>
    %114 = vector.broadcast %113 : vector<1x128xf32> to vector<96x128xf32>
    %115 = arith.mulf %106, %114 : vector<96x128xf32>
    %116 = arith.addf %93, %115 : vector<96x128xf32>
    %117 = vector.extract_strided_slice %1 {offsets = [2, 4, 0], sizes = [1, 1, 128], strides = [1, 1, 1]} : vector<4x8x128xf32> to vector<1x1x128xf32>
    %118 = vector.shape_cast %117 : vector<1x1x128xf32> to vector<1x128xf32>
    %119 = vector.broadcast %118 : vector<1x128xf32> to vector<96x128xf32>
    %120 = arith.mulf %106, %119 : vector<96x128xf32>
    %121 = arith.addf %98, %120 : vector<96x128xf32>
    %122 = vector.extract_strided_slice %1 {offsets = [3, 4, 0], sizes = [1, 1, 128], strides = [1, 1, 1]} : vector<4x8x128xf32> to vector<1x1x128xf32>
    %123 = vector.shape_cast %122 : vector<1x1x128xf32> to vector<1x128xf32>
    %124 = vector.broadcast %123 : vector<1x128xf32> to vector<96x128xf32>
    %125 = arith.mulf %106, %124 : vector<96x128xf32>
    %126 = arith.addf %103, %125 : vector<96x128xf32>
    %c5 = arith.constant 5 : index
    %c0_17 = arith.constant 0 : index
    %c0_18 = arith.constant 0 : index
    %127 = vector.load %arg2[%c5, %c0_17, %c0_18] : memref<8x96x128xbf16, #tpu.memory_space<vmem>>, vector<1x96x128xbf16>
    %128 = vector.shape_cast %127 : vector<1x96x128xbf16> to vector<96x128xbf16>
    %129 = arith.extf %128 : vector<96x128xbf16> to vector<96x128xf32>
    %130 = vector.extract_strided_slice %1 {offsets = [0, 5, 0], sizes = [1, 1, 128], strides = [1, 1, 1]} : vector<4x8x128xf32> to vector<1x1x128xf32>
    %131 = vector.shape_cast %130 : vector<1x1x128xf32> to vector<1x128xf32>
    %132 = vector.broadcast %131 : vector<1x128xf32> to vector<96x128xf32>
    %133 = arith.mulf %129, %132 : vector<96x128xf32>
    %134 = arith.addf %111, %133 : vector<96x128xf32>
    %135 = vector.extract_strided_slice %1 {offsets = [1, 5, 0], sizes = [1, 1, 128], strides = [1, 1, 1]} : vector<4x8x128xf32> to vector<1x1x128xf32>
    %136 = vector.shape_cast %135 : vector<1x1x128xf32> to vector<1x128xf32>
    %137 = vector.broadcast %136 : vector<1x128xf32> to vector<96x128xf32>
    %138 = arith.mulf %129, %137 : vector<96x128xf32>
    %139 = arith.addf %116, %138 : vector<96x128xf32>
    %140 = vector.extract_strided_slice %1 {offsets = [2, 5, 0], sizes = [1, 1, 128], strides = [1, 1, 1]} : vector<4x8x128xf32> to vector<1x1x128xf32>
    %141 = vector.shape_cast %140 : vector<1x1x128xf32> to vector<1x128xf32>
    %142 = vector.broadcast %141 : vector<1x128xf32> to vector<96x128xf32>
    %143 = arith.mulf %129, %142 : vector<96x128xf32>
    %144 = arith.addf %121, %143 : vector<96x128xf32>
    %145 = vector.extract_strided_slice %1 {offsets = [3, 5, 0], sizes = [1, 1, 128], strides = [1, 1, 1]} : vector<4x8x128xf32> to vector<1x1x128xf32>
    %146 = vector.shape_cast %145 : vector<1x1x128xf32> to vector<1x128xf32>
    %147 = vector.broadcast %146 : vector<1x128xf32> to vector<96x128xf32>
    %148 = arith.mulf %129, %147 : vector<96x128xf32>
    %149 = arith.addf %126, %148 : vector<96x128xf32>
    %c6 = arith.constant 6 : index
    %c0_19 = arith.constant 0 : index
    %c0_20 = arith.constant 0 : index
    %150 = vector.load %arg2[%c6, %c0_19, %c0_20] : memref<8x96x128xbf16, #tpu.memory_space<vmem>>, vector<1x96x128xbf16>
    %151 = vector.shape_cast %150 : vector<1x96x128xbf16> to vector<96x128xbf16>
    %152 = arith.extf %151 : vector<96x128xbf16> to vector<96x128xf32>
    %153 = vector.extract_strided_slice %1 {offsets = [0, 6, 0], sizes = [1, 1, 128], strides = [1, 1, 1]} : vector<4x8x128xf32> to vector<1x1x128xf32>
    %154 = vector.shape_cast %153 : vector<1x1x128xf32> to vector<1x128xf32>
    %155 = vector.broadcast %154 : vector<1x128xf32> to vector<96x128xf32>
    %156 = arith.mulf %152, %155 : vector<96x128xf32>
    %157 = arith.addf %134, %156 : vector<96x128xf32>
    %158 = vector.extract_strided_slice %1 {offsets = [1, 6, 0], sizes = [1, 1, 128], strides = [1, 1, 1]} : vector<4x8x128xf32> to vector<1x1x128xf32>
    %159 = vector.shape_cast %158 : vector<1x1x128xf32> to vector<1x128xf32>
    %160 = vector.broadcast %159 : vector<1x128xf32> to vector<96x128xf32>
    %161 = arith.mulf %152, %160 : vector<96x128xf32>
    %162 = arith.addf %139, %161 : vector<96x128xf32>
    %163 = vector.extract_strided_slice %1 {offsets = [2, 6, 0], sizes = [1, 1, 128], strides = [1, 1, 1]} : vector<4x8x128xf32> to vector<1x1x128xf32>
    %164 = vector.shape_cast %163 : vector<1x1x128xf32> to vector<1x128xf32>
    %165 = vector.broadcast %164 : vector<1x128xf32> to vector<96x128xf32>
    %166 = arith.mulf %152, %165 : vector<96x128xf32>
    %167 = arith.addf %144, %166 : vector<96x128xf32>
    %168 = vector.extract_strided_slice %1 {offsets = [3, 6, 0], sizes = [1, 1, 128], strides = [1, 1, 1]} : vector<4x8x128xf32> to vector<1x1x128xf32>
    %169 = vector.shape_cast %168 : vector<1x1x128xf32> to vector<1x128xf32>
    %170 = vector.broadcast %169 : vector<1x128xf32> to vector<96x128xf32>
    %171 = arith.mulf %152, %170 : vector<96x128xf32>
    %172 = arith.addf %149, %171 : vector<96x128xf32>
    %c7 = arith.constant 7 : index
    %c0_21 = arith.constant 0 : index
    %c0_22 = arith.constant 0 : index
    %173 = vector.load %arg2[%c7, %c0_21, %c0_22] : memref<8x96x128xbf16, #tpu.memory_space<vmem>>, vector<1x96x128xbf16>
    %174 = vector.shape_cast %173 : vector<1x96x128xbf16> to vector<96x128xbf16>
    %175 = arith.extf %174 : vector<96x128xbf16> to vector<96x128xf32>
    %176 = vector.extract_strided_slice %1 {offsets = [0, 7, 0], sizes = [1, 1, 128], strides = [1, 1, 1]} : vector<4x8x128xf32> to vector<1x1x128xf32>
    %177 = vector.shape_cast %176 : vector<1x1x128xf32> to vector<1x128xf32>
    %178 = vector.broadcast %177 : vector<1x128xf32> to vector<96x128xf32>
    %179 = arith.mulf %175, %178 : vector<96x128xf32>
    %180 = arith.addf %157, %179 : vector<96x128xf32>
    %181 = vector.extract_strided_slice %1 {offsets = [1, 7, 0], sizes = [1, 1, 128], strides = [1, 1, 1]} : vector<4x8x128xf32> to vector<1x1x128xf32>
    %182 = vector.shape_cast %181 : vector<1x1x128xf32> to vector<1x128xf32>
    %183 = vector.broadcast %182 : vector<1x128xf32> to vector<96x128xf32>
    %184 = arith.mulf %175, %183 : vector<96x128xf32>
    %185 = arith.addf %162, %184 : vector<96x128xf32>
    %186 = vector.extract_strided_slice %1 {offsets = [2, 7, 0], sizes = [1, 1, 128], strides = [1, 1, 1]} : vector<4x8x128xf32> to vector<1x1x128xf32>
    %187 = vector.shape_cast %186 : vector<1x1x128xf32> to vector<1x128xf32>
    %188 = vector.broadcast %187 : vector<1x128xf32> to vector<96x128xf32>
    %189 = arith.mulf %175, %188 : vector<96x128xf32>
    %190 = arith.addf %167, %189 : vector<96x128xf32>
    %191 = vector.extract_strided_slice %1 {offsets = [3, 7, 0], sizes = [1, 1, 128], strides = [1, 1, 1]} : vector<4x8x128xf32> to vector<1x1x128xf32>
    %192 = vector.shape_cast %191 : vector<1x1x128xf32> to vector<1x128xf32>
    %193 = vector.broadcast %192 : vector<1x128xf32> to vector<96x128xf32>
    %194 = arith.mulf %175, %193 : vector<96x128xf32>
    %195 = arith.addf %172, %194 : vector<96x128xf32>
    %c0_23 = arith.constant 0 : index
    %c0_24 = arith.constant 0 : index
    %196 = vector.load %arg6[%c0_23, %c0_24] : memref<1x128xf32, #tpu.memory_space<vmem>>, vector<1x128xf32>
    %cst = arith.constant 0.000000e+00 : f32
    %197 = vector.broadcast %cst : f32 to vector<96x128xf32>
    %198 = arith.maximumf %180, %197 : vector<96x128xf32>
    %199 = vector.extract_strided_slice %3 {offsets = [0, 0], sizes = [1, 128], strides = [1, 1]} : vector<4x128xf32> to vector<1x128xf32>
    %200 = vector.broadcast %199 : vector<1x128xf32> to vector<96x128xf32>
    %201 = arith.mulf %198, %200 : vector<96x128xf32>
    %202 = vector.broadcast %196 : vector<1x128xf32> to vector<96x128xf32>
    %203 = arith.addf %202, %201 : vector<96x128xf32>
    %cst_25 = arith.constant 0.000000e+00 : f32
    %204 = vector.broadcast %cst_25 : f32 to vector<96x128xf32>
    %205 = arith.maximumf %185, %204 : vector<96x128xf32>
    %206 = vector.extract_strided_slice %3 {offsets = [1, 0], sizes = [1, 128], strides = [1, 1]} : vector<4x128xf32> to vector<1x128xf32>
    %207 = vector.broadcast %206 : vector<1x128xf32> to vector<96x128xf32>
    %208 = arith.mulf %205, %207 : vector<96x128xf32>
    %209 = arith.addf %203, %208 : vector<96x128xf32>
    %cst_26 = arith.constant 0.000000e+00 : f32
    %210 = vector.broadcast %cst_26 : f32 to vector<96x128xf32>
    %211 = arith.maximumf %190, %210 : vector<96x128xf32>
    %212 = vector.extract_strided_slice %3 {offsets = [2, 0], sizes = [1, 128], strides = [1, 1]} : vector<4x128xf32> to vector<1x128xf32>
    %213 = vector.broadcast %212 : vector<1x128xf32> to vector<96x128xf32>
    %214 = arith.mulf %211, %213 : vector<96x128xf32>
    %215 = arith.addf %209, %214 : vector<96x128xf32>
    %cst_27 = arith.constant 0.000000e+00 : f32
    %216 = vector.broadcast %cst_27 : f32 to vector<96x128xf32>
    %217 = arith.maximumf %195, %216 : vector<96x128xf32>
    %218 = vector.extract_strided_slice %3 {offsets = [3, 0], sizes = [1, 128], strides = [1, 1]} : vector<4x128xf32> to vector<1x128xf32>
    %219 = vector.broadcast %218 : vector<1x128xf32> to vector<96x128xf32>
    %220 = arith.mulf %217, %219 : vector<96x128xf32>
    %221 = arith.addf %215, %220 : vector<96x128xf32>
    %c0_28 = arith.constant 0 : index
    %c0_29 = arith.constant 0 : index
    %222 = vector.load %arg7[%c0_28, %c0_29] : memref<96x128xf32, #tpu.memory_space<vmem>>, vector<96x128xf32>
    tpu.vector_store %arg7[%c0_28, %c0_29], %221 {strides = array<i32>} : memref<96x128xf32, #tpu.memory_space<vmem>>, vector<96x128xf32>,
    return
  }
  func.func @transform_0(%arg0: i32, %arg1: i32) -> (i32, i32, i32) {
    %c0_i32 = arith.constant 0 : i32
    %c0_i32_0 = arith.constant 0 : i32
    return %c0_i32, %arg1, %arg0 : i32, i32, i32
  }
  func.func @transform_1(%arg0: i32, %arg1: i32) -> (i32, i32, i32) {
    %c0_i32 = arith.constant 0 : i32
    %c0_i32_0 = arith.constant 0 : i32
    %c0_i32_1 = arith.constant 0 : i32
    return %c0_i32, %c0_i32_0, %arg0 : i32, i32, i32
  }
  func.func @transform_2(%arg0: i32, %arg1: i32) -> (i32, i32) {
    %c0_i32 = arith.constant 0 : i32
    %c0_i32_0 = arith.constant 0 : i32
    return %c0_i32, %arg0 : i32, i32
  }
  func.func @transform_3(%arg0: i32, %arg1: i32) -> (i32, i32) {
    %c0_i32 = arith.constant 0 : i32
    %c0_i32_0 = arith.constant 0 : i32
    return %c0_i32, %arg0 : i32, i32
  }
  func.func @transform_4(%arg0: i32, %arg1: i32) -> (i32, i32) {
    %c0_i32 = arith.constant 0 : i32
    %c0_i32_0 = arith.constant 0 : i32
    return %c0_i32, %arg0 : i32, i32
  }
  func.func @transform_5(%arg0: i32, %arg1: i32) -> (i32, i32) {
    %c0_i32 = arith.constant 0 : i32
    return %arg1, %arg0 : i32, i32
  }
}

</mosaic_0001>

<llo_original>
// kernel: tpu_custom_call.1
$region0: #{tpu_custom_call.1}
  #allocation0 [shape = 'u32[]', space=smem, size = 0x4, offset = 0x4, fixed_abs, tag = 'smem constant byte address 0x4 - core index']
  #allocation1 [shape = 'u32[144,128]{1,0:T(1,128)}', space=vmem, size = 0x12000, scoped, tag = 'internal scratch']
  #allocation12 [shape = 's32[]', space=sflag, size = 0x4, offset = 0, fixed_abs, tag = 'sflag constant byte address 0x0 - dummy sync flag']
  %s0 = inlined_call_operand.hbm [shape: bf16[8,192,640], index: 0, kind: input, shape index: {}]
  %s1 = inlined_call_operand.hbm [shape: bf16[4,8,640], index: 1, kind: input, shape index: {}]
  %s2 = inlined_call_operand.hbm [shape: f32[4,640], index: 2, kind: input, shape index: {}]
  %s3 = inlined_call_operand.hbm [shape: f32[4,640], index: 3, kind: input, shape index: {}]
  %s4 = inlined_call_operand.hbm [shape: f32[1,640], index: 4, kind: input, shape index: {}]
  %s5 = inlined_call_operand.hbm [shape: f32[192,640], index: 5, kind: output, shape index: {}]
  %s6 = sld [smem:[#allocation0]]
  $region73: #{tpu_custom_call.1} parent=0
    _
  %s8 = ssub.s32 1, %s6
  %s9 = scalar_select 0, %s8, %s6
  $region1: #{tpu_custom_call.1} parent=0
    #allocation2 [shape = 'u8[393216]{0}', space=vmem, size = 0x60000, scoped, tag = 'input window, operand 0']
    #allocation3 [shape = 's32[2]{0}', space=sflag, size = 0x8, scoped, tag = 'scoped memory for tpu_custom_call.1']
    #allocation4 [shape = 's32[2]{0}', space=sflag, size = 0x8, scoped, tag = 'scoped memory for tpu_custom_call.1']
    #allocation5 [shape = 'u8[16384]{0}', space=vmem, size = 0x4000, scoped, tag = 'input window, operand 1']
    #allocation6 [shape = 's32[2]{0}', space=sflag, size = 0x8, scoped, tag = 'scoped memory for tpu_custom_call.1']
    #allocation7 [shape = 'u8[4096]{0}', space=vmem, size = 0x1000, scoped, tag = 'input window, operand 2']
    #allocation8 [shape = 'u8[4096]{0}', space=vmem, size = 0x1000, scoped, tag = 'input window, operand 3']
    #allocation9 [shape = 's32[2]{0}', space=sflag, size = 0x8, scoped, tag = 'scoped memory for tpu_custom_call.1']
    #allocation10 [shape = 'u8[1024]{0}', space=vmem, size = 0x400, scoped, tag = 'input window, operand 4']
    #allocation11 [shape = 'u8[98304]{0}', space=vmem, size = 0x18000, scoped, tag = 'output window, operand 0']
    %10 = vsyncpa [#allocation3], 0
    %s11 = scalar_lea.sflag [#allocation3], 1
    %12 = vsyncpa %s11, 0
    %13 = vsyncpa [#allocation6], 0
    %s14 = scalar_lea.sflag [#allocation6], 1
    %15 = vsyncpa %s14, 0
    %16 = vsyncpa [#allocation9], 0
    %s17 = scalar_lea.sflag [#allocation9], 1
    %18 = vsyncpa %s17, 0
    %19 = vsyncpa [#allocation4], 0
    %s20 = scalar_lea.sflag [#allocation4], 1
    %21 = vsyncpa %s20, 0
    loop: start=0, step=1, limit=12
    $region2: #{tpu_custom_call.1} parent=1 // loop_pre_header
      _
    $region3: #{tpu_custom_call.1} parent=1 // loop_header
      %s23 = sphi 0, %s27
      %p24 = scmp.ge.s32.totalorder %s23, 12
      %s30 = sphi 0, %s42
      %s31 = sphi 0, %s38
      %s32 = sphi 0, %s30
      %s33 = sphi 0, %s31
      %s34 = sphi 0, %s32
      %s35 = sphi 0, %s33
      %s47 = sphi 0, %s49
      %s50 = sphi 0, %s47
      %s51 = sphi 0, %s50
      %s67 = sphi 0, %s51
      %s73 = sphi 0, %s75
      %s76 = sphi 0, %s73
      %s77 = sphi 0, %s76
      %s93 = sphi 0, %s77
      %s99 = sphi 0, %s101
      %s102 = sphi 0, %s99
      %s103 = sphi 0, %s102
      %s119 = sphi 0, %s103
      %s125 = sphi 0, %s127
      %s128 = sphi 0, %s125
      %s129 = sphi 0, %s128
      %s145 = sphi 0, %s129
      %s151 = sphi 0, %s153
      %s154 = sphi 0, %s151
      %s155 = sphi 0, %s154
      %s171 = sphi 0, %s155
      %s179 = sphi 0, %s181
      %s182 = sphi 0, %s179
      %s183 = sphi 0, %s182
      %s199 = sphi 0, %s183
    $region4: #{tpu_custom_call.1} parent=1 // loop_header_branch
      %26 = sbr.rel (%p24) target = $region8
    $region5: #{tpu_custom_call.1} parent=1 // loop_body
      %s28 = ssub.s32 %s23, 1
      %s29 = ssub.s32 %s23, 2
      %s36 = sadd.s32 1, %s31
      %p37 = scmp.ge.s32.totalorder %s36, 2
      %s38 = scalar_select %p37, 0, %s36
      %s39 = sadd.s32 1, %s30
      %s40 = scalar_select %p37, %s39, %s30
      %p41 = scmp.ge.s32.totalorder %s40, 5
      %s42 = scalar_select %p41, 0, %s40
      %s43 = ssub.s32 %s31, %s38
      %s44 = ssub.s32 %s30, %s42
      %s45 = sor.u32 %s43, %s44
      %p46 = scmp.eq.s32.totalorder %s45, 0
      %s48 = sadd.s32 %s47, 1
      %s49 = scalar_select %p46, %s47, %s48
      %p52 = pneg %p46
      %p53 = scmp.eq.s32.totalorder %s23, 9
      %p54 = por %p52, %p53
      %p55 = scmp.ne.s32.totalorder %s47, %s50
      %p56 = scmp.eq.s32.totalorder %s23, 0
      %p57 = por %p55, %p56
      %p58 = scmp.ne.s32.totalorder %s47, %s50
      %p59 = scmp.eq.s32.totalorder %s28, 9
      %p60 = por %p58, %p59
      %p61 = scmp.ne.s32.totalorder %s50, %s51
      %p62 = scmp.eq.s32.totalorder %s28, 0
      %p63 = por %p61, %p62
      %p64 = scmp.ne.s32.totalorder %s50, %s51
      %p65 = scmp.eq.s32.totalorder %s29, 9
      %p66 = por %p64, %p65
      %p68 = scmp.ne.s32.totalorder %s51, %s67
      %p69 = scmp.eq.s32.totalorder %s29, 0
      %p70 = por %p68, %p69
      %s71 = ssub.s32 %s30, %s42
      %p72 = scmp.eq.s32.totalorder %s71, 0
      %s74 = sadd.s32 %s73, 1
      %s75 = scalar_select %p72, %s73, %s74
      %p78 = pneg %p72
      %p79 = scmp.eq.s32.totalorder %s23, 9
      %p80 = por %p78, %p79
      %p81 = scmp.ne.s32.totalorder %s73, %s76
      %p82 = scmp.eq.s32.totalorder %s23, 0
      %p83 = por %p81, %p82
      %p84 = scmp.ne.s32.totalorder %s73, %s76
      %p85 = scmp.eq.s32.totalorder %s28, 9
      %p86 = por %p84, %p85
      %p87 = scmp.ne.s32.totalorder %s76, %s77
      %p88 = scmp.eq.s32.totalorder %s28, 0
      %p89 = por %p87, %p88
      %p90 = scmp.ne.s32.totalorder %s76, %s77
      %p91 = scmp.eq.s32.totalorder %s29, 9
      %p92 = por %p90, %p91
      %p94 = scmp.ne.s32.totalorder %s77, %s93
      %p95 = scmp.eq.s32.totalorder %s29, 0
      %p96 = por %p94, %p95
      %s97 = ssub.s32 %s30, %s42
      %p98 = scmp.eq.s32.totalorder %s97, 0
      %s100 = sadd.s32 %s99, 1
      %s101 = scalar_select %p98, %s99, %s100
      %p104 = pneg %p98
      %p105 = scmp.eq.s32.totalorder %s23, 9
      %p106 = por %p104, %p105
      %p107 = scmp.ne.s32.totalorder %s99, %s102
      %p108 = scmp.eq.s32.totalorder %s23, 0
      %p109 = por %p107, %p108
      %p110 = scmp.ne.s32.totalorder %s99, %s102
      %p111 = scmp.eq.s32.totalorder %s28, 9
      %p112 = por %p110, %p111
      %p113 = scmp.ne.s32.totalorder %s102, %s103
      %p114 = scmp.eq.s32.totalorder %s28, 0
      %p115 = por %p113, %p114
      %p116 = scmp.ne.s32.totalorder %s102, %s103
      %p117 = scmp.eq.s32.totalorder %s29, 9
      %p118 = por %p116, %p117
      %p120 = scmp.ne.s32.totalorder %s103, %s119
      %p121 = scmp.eq.s32.totalorder %s29, 0
      %p122 = por %p120, %p121
      %s123 = ssub.s32 %s30, %s42
      %p124 = scmp.eq.s32.totalorder %s123, 0
      %s126 = sadd.s32 %s125, 1
      %s127 = scalar_select %p124, %s125, %s126
      %p130 = pneg %p124
      %p131 = scmp.eq.s32.totalorder %s23, 9
      %p132 = por %p130, %p131
      %p133 = scmp.ne.s32.totalorder %s125, %s128
      %p134 = scmp.eq.s32.totalorder %s23, 0
      %p135 = por %p133, %p134
      %p136 = scmp.ne.s32.totalorder %s125, %s128
      %p137 = scmp.eq.s32.totalorder %s28, 9
      %p138 = por %p136, %p137
      %p139 = scmp.ne.s32.totalorder %s128, %s129
      %p140 = scmp.eq.s32.totalorder %s28, 0
      %p141 = por %p139, %p140
      %p142 = scmp.ne.s32.totalorder %s128, %s129
      %p143 = scmp.eq.s32.totalorder %s29, 9
      %p144 = por %p142, %p143
      %p146 = scmp.ne.s32.totalorder %s129, %s145
      %p147 = scmp.eq.s32.totalorder %s29, 0
      %p148 = por %p146, %p147
      %s149 = ssub.s32 %s30, %s42
      %p150 = scmp.eq.s32.totalorder %s149, 0
      %s152 = sadd.s32 %s151, 1
      %s153 = scalar_select %p150, %s151, %s152
      %p156 = pneg %p150
      %p157 = scmp.eq.s32.totalorder %s23, 9
      %p158 = por %p156, %p157
      %p159 = scmp.ne.s32.totalorder %s151, %s154
      %p160 = scmp.eq.s32.totalorder %s23, 0
      %p161 = por %p159, %p160
      %p162 = scmp.ne.s32.totalorder %s151, %s154
      %p163 = scmp.eq.s32.totalorder %s28, 9
      %p164 = por %p162, %p163
      %p165 = scmp.ne.s32.totalorder %s154, %s155
      %p166 = scmp.eq.s32.totalorder %s28, 0
      %p167 = por %p165, %p166
      %p168 = scmp.ne.s32.totalorder %s154, %s155
      %p169 = scmp.eq.s32.totalorder %s29, 9
      %p170 = por %p168, %p169
      %p172 = scmp.ne.s32.totalorder %s155, %s171
      %p173 = scmp.eq.s32.totalorder %s29, 0
      %p174 = por %p172, %p173
      %s175 = ssub.s32 %s31, %s38
      %s176 = ssub.s32 %s30, %s42
      %s177 = sor.u32 %s175, %s176
      %p178 = scmp.eq.s32.totalorder %s177, 0
      %s180 = sadd.s32 %s179, 1
      %s181 = scalar_select %p178, %s179, %s180
      %p184 = pneg %p178
      %p185 = scmp.eq.s32.totalorder %s23, 9
      %p186 = por %p184, %p185
      %p187 = scmp.ne.s32.totalorder %s179, %s182
      %p188 = scmp.eq.s32.totalorder %s23, 0
      %p189 = por %p187, %p188
      %p190 = scmp.ne.s32.totalorder %s179, %s182
      %p191 = scmp.eq.s32.totalorder %s28, 9
      %p192 = por %p190, %p191
      %p193 = scmp.ne.s32.totalorder %s182, %s183
      %p194 = scmp.eq.s32.totalorder %s28, 0
      %p195 = por %p193, %p194
      %p196 = scmp.ne.s32.totalorder %s182, %s183
      %p197 = scmp.eq.s32.totalorder %s29, 9
      %p198 = por %p196, %p197
      %p200 = scmp.ne.s32.totalorder %s183, %s199
      %p201 = scmp.eq.s32.totalorder %s29, 0
      %p202 = por %p200, %p201
      %p203 = scmp.le.s32.totalorder 1, %s23
      %p204 = scmp.lt.s32.totalorder %s23, 11
      %p205 = pnand %p203, %p204
      %p206 = pneg %p205
      // Predicated region
      $region9: #{tpu_custom_call.1} parent=5 // pred_check
        _
      $region10: #{tpu_custom_call.1} parent=5 // pred_check_branch
        %208 = sbr.rel (%p205) target = $region12
      $region11: #{tpu_custom_call.1} parent=5 // pred_region
        %s209 = ssub.s32 %s23, 1
      $region12: #{tpu_custom_call.1} parent=5 // pred_fallthru
        _
      %p210 = scmp.lt.s32.totalorder %s23, 10
      // Predicated region
      $region13: #{tpu_custom_call.1} parent=5 // pred_check
        %p211 = pneg %p210
      $region14: #{tpu_custom_call.1} parent=5 // pred_check_branch
        %213 = sbr.rel (%p211) target = $region16
      $region15: #{tpu_custom_call.1} parent=5 // pred_region
        // Predicated region
        $region17: #{tpu_custom_call.1} parent=15 // pred_check
          %p214 = pneg %p57
        $region18: #{tpu_custom_call.1} parent=15 // pred_check_branch
          %216 = sbr.rel (%p214) target = $region20
        $region19: #{tpu_custom_call.1} parent=15 // pred_region
          #allocation13 [shape = 'u32[6]{0}', space=smem, size = 0x18, scoped, tag = 'DMA stride descriptor']
          %s217 = sand.u32 %s47, 1
          %s218 = scalar_lea.sflag [#allocation3], %s217
          %s219 = sand.u32 %s47, 1
          %s220 = smul.addr %s219, 384
          %s221 = scalar_lea.vmem [#allocation2], %s220
          %s222 = smul.u32 12, %s31
          %s224 = ssub.s32 6144, 6144
          %225 = vsyncadd %s218, %s224
          %s226 = smul.addr %s222, 5
          %s227 = sadd.s32 %s30, %s226
          %s228 = smul.addr %s227, 64
          %s229 = scalar_lea.hbm %s0, %s228
          %s231 = sshll.u32 1, 14
          %s232 = sxor.u32 4294967295, %s231
          %s234 = sld [smem:[#allocation0]]
          %s235 = sadd.s32 2, %s234
          %s237 = sshll.u32 7, 26
          %s238 = sxor.u32 4294967295, %s237
          %s239 = sand.u32 0, %s238
          %s240 = sshll.u32 %s235, 26
          %s241 = sor.u32 %s239, %s240
          %s242 = sshll.u32 %s221, 4
          %s243 = int_to_ptr.vmem [resolvable:$true] %s242
          %249 = sst [smem:[#allocation13]] 7680
          %s250 = scalar_lea.smem [#allocation13], 1
          %251 = sst [smem:[%s250]] 768
          %s252 = scalar_lea.smem [#allocation13], 2
          %253 = sst [smem:[%s252]] 12
          %s254 = scalar_lea.smem [#allocation13], 3
          %255 = sst [smem:[%s254]] 320
          %s256 = scalar_lea.smem [#allocation13], 4
          %257 = sst [smem:[%s256]] 64
          %s258 = scalar_lea.smem [#allocation13], 5
          %259 = sst [smem:[%s258]] 4
          %261 = dma.general %s229, 6144, %s243, %s218, [#allocation12], [#allocation13], %s241, 0
        $region20: #{tpu_custom_call.1} parent=15 // pred_fallthru
          _
        // Predicated region
        $region21: #{tpu_custom_call.1} parent=15 // pred_check
          %p262 = pneg %p83
        $region22: #{tpu_custom_call.1} parent=15 // pred_check_branch
          %264 = sbr.rel (%p262) target = $region24
        $region23: #{tpu_custom_call.1} parent=15 // pred_region
          %s265 = sand.u32 %s23, 1
          %s266 = scalar_lea.sflag [#allocation6], %s265
          %s267 = sand.u32 %s73, 1
          %s268 = smul.addr %s267, 16
          %s269 = scalar_lea.vmem [#allocation5], %s268
          %s271 = ssub.s32 256, 256
          %272 = vsyncadd %s266, %s271
          %s273 = smul.addr %s30, 64
          %s274 = scalar_lea.hbm %s1, %s273
          %s275 = sshll.u32 %s269, 4
          %s276 = int_to_ptr.vmem [resolvable:$true] %s275
          %281 = dma.hbm_to_vmem [thread:$0]  %s274, 256, %s276, %s266, 320, 64, 4
        $region24: #{tpu_custom_call.1} parent=15 // pred_fallthru
          _
        // Predicated region
        $region25: #{tpu_custom_call.1} parent=15 // pred_check
          %p282 = pneg %p109
        $region26: #{tpu_custom_call.1} parent=15 // pred_check_branch
          %284 = sbr.rel (%p282) target = $region28
        $region27: #{tpu_custom_call.1} parent=15 // pred_region
          %s285 = sand.u32 %s23, 1
          %s286 = scalar_lea.sflag [#allocation6], %s285
          %s287 = sand.u32 %s99, 1
          %s288 = smul.addr %s287, 4
          %s289 = scalar_lea.vmem [#allocation7], %s288
          %s291 = ssub.s32 64, 64
          %292 = vsyncadd %s286, %s291
          %s293 = smul.addr %s30, 64
          %s294 = scalar_lea.hbm %s2, %s293
          %s296 = sshll.u32 %s289, 4
          %s297 = int_to_ptr.vmem [resolvable:$true] %s296
          %299 = dma.hbm_to_vmem [thread:$0]  %s294, 64, %s297, %s286
        $region28: #{tpu_custom_call.1} parent=15 // pred_fallthru
          _
        // Predicated region
        $region29: #{tpu_custom_call.1} parent=15 // pred_check
          %p300 = pneg %p135
        $region30: #{tpu_custom_call.1} parent=15 // pred_check_branch
          %302 = sbr.rel (%p300) target = $region32
        $region31: #{tpu_custom_call.1} parent=15 // pred_region
          %s303 = sand.u32 %s23, 1
          %s304 = scalar_lea.sflag [#allocation9], %s303
          %s305 = sand.u32 %s125, 1
          %s306 = smul.addr %s305, 4
          %s307 = scalar_lea.vmem [#allocation8], %s306
          %s309 = ssub.s32 64, 64
          %310 = vsyncadd %s304, %s309
          %s311 = smul.addr %s30, 64
          %s312 = scalar_lea.hbm %s3, %s311
          %s314 = sshll.u32 %s307, 4
          %s315 = int_to_ptr.vmem [resolvable:$true] %s314
          %317 = dma.hbm_to_vmem [thread:$0]  %s312, 64, %s315, %s304
        $region32: #{tpu_custom_call.1} parent=15 // pred_fallthru
          _
        // Predicated region
        $region33: #{tpu_custom_call.1} parent=15 // pred_check
          %p318 = pneg %p161
        $region34: #{tpu_custom_call.1} parent=15 // pred_check_branch
          %320 = sbr.rel (%p318) target = $region36
        $region35: #{tpu_custom_call.1} parent=15 // pred_region
          %s321 = sand.u32 %s23, 1
          %s322 = scalar_lea.sflag [#allocation9], %s321
          %s323 = sand.u32 %s151, 1
          %s324 = scalar_lea.vmem [#allocation10], %s323
          %s326 = ssub.s32 16, 16
          %327 = vsyncadd %s322, %s326
          %s328 = smul.addr %s30, 16
          %s329 = scalar_lea.hbm %s4, %s328
          %s331 = sshll.u32 %s324, 4
          %s332 = int_to_ptr.vmem [resolvable:$true] %s331
          %334 = dma.hbm_to_vmem [thread:$0]  %s329, 16, %s332, %s322
        $region36: #{tpu_custom_call.1} parent=15 // pred_fallthru
          _
      $region16: #{tpu_custom_call.1} parent=5 // pred_fallthru
        _
      %p335 = scmp.le.s32.totalorder 1, %s23
      %p336 = scmp.lt.s32.totalorder %s23, 11
      %p337 = pnand %p335, %p336
      %p338 = pneg %p337
      // Predicated region
      $region37: #{tpu_custom_call.1} parent=5 // pred_check
        _
      $region38: #{tpu_custom_call.1} parent=5 // pred_check_branch
        %340 = sbr.rel (%p337) target = $region40
      $region39: #{tpu_custom_call.1} parent=5 // pred_region
        %s341 = ssub.s32 %s23, 1
        %s342 = sand.u32 %s50, 1
        %s343 = scalar_lea.sflag [#allocation3], %s342
        %s344 = sand.u32 %s50, 1
        %s345 = smul.addr %s344, 384
        %s346 = scalar_lea.vmem [#allocation2], %s345
        // Predicated region
        $region41: #{tpu_custom_call.1} parent=39 // pred_check
          %p347 = pneg %p63
        $region42: #{tpu_custom_call.1} parent=39 // pred_check_branch
          %349 = sbr.rel (%p347) target = $region44
        $region43: #{tpu_custom_call.1} parent=39 // pred_region
          %350 = dma.done %s343, 6144
        $region44: #{tpu_custom_call.1} parent=39 // pred_fallthru
          _
        %s351 = sand.u32 %s28, 1
        %s352 = scalar_lea.sflag [#allocation6], %s351
        %s353 = sand.u32 %s76, 1
        %s354 = smul.addr %s353, 16
        %s355 = scalar_lea.vmem [#allocation5], %s354
        // Predicated region
        $region45: #{tpu_custom_call.1} parent=39 // pred_check
          %p356 = pneg %p89
        $region46: #{tpu_custom_call.1} parent=39 // pred_check_branch
          %358 = sbr.rel (%p356) target = $region48
        $region47: #{tpu_custom_call.1} parent=39 // pred_region
          %359 = dma.done %s352, 256
        $region48: #{tpu_custom_call.1} parent=39 // pred_fallthru
          _
        %s360 = sand.u32 %s28, 1
        %s361 = scalar_lea.sflag [#allocation6], %s360
        %s362 = sand.u32 %s102, 1
        %s363 = smul.addr %s362, 4
        %s364 = scalar_lea.vmem [#allocation7], %s363
        // Predicated region
        $region49: #{tpu_custom_call.1} parent=39 // pred_check
          %p365 = pneg %p115
        $region50: #{tpu_custom_call.1} parent=39 // pred_check_branch
          %367 = sbr.rel (%p365) target = $region52
        $region51: #{tpu_custom_call.1} parent=39 // pred_region
          %368 = dma.done %s361, 64
        $region52: #{tpu_custom_call.1} parent=39 // pred_fallthru
          _
        %s369 = sand.u32 %s28, 1
        %s370 = scalar_lea.sflag [#allocation9], %s369
        %s371 = sand.u32 %s128, 1
        %s372 = smul.addr %s371, 4
        %s373 = scalar_lea.vmem [#allocation8], %s372
        // Predicated region
        $region53: #{tpu_custom_call.1} parent=39 // pred_check
          %p374 = pneg %p141
        $region54: #{tpu_custom_call.1} parent=39 // pred_check_branch
          %376 = sbr.rel (%p374) target = $region56
        $region55: #{tpu_custom_call.1} parent=39 // pred_region
          %377 = dma.done %s370, 64
        $region56: #{tpu_custom_call.1} parent=39 // pred_fallthru
          _
        %s378 = sand.u32 %s28, 1
        %s379 = scalar_lea.sflag [#allocation9], %s378
        %s380 = sand.u32 %s154, 1
        %s381 = scalar_lea.vmem [#allocation10], %s380
        // Predicated region
        $region57: #{tpu_custom_call.1} parent=39 // pred_check
          %p382 = pneg %p167
        $region58: #{tpu_custom_call.1} parent=39 // pred_check_branch
          %384 = sbr.rel (%p382) target = $region60
        $region59: #{tpu_custom_call.1} parent=39 // pred_region
          %385 = dma.done %s379, 16
        $region60: #{tpu_custom_call.1} parent=39 // pred_fallthru
          _
        %s386 = sand.u32 %s50, 1
        %s387 = scalar_lea.sflag [#allocation3], %s386
        %s388 = sand.u32 %s50, 1
        %s389 = smul.addr %s388, 384
        %s390 = scalar_lea.vmem [#allocation2], %s389
        %p391 = pneg %p63
        %p392 = pneg %p60
        %s393 = sand.u32 %s28, 1
        %s394 = scalar_lea.sflag [#allocation6], %s393
        %s395 = sand.u32 %s76, 1
        %s396 = smul.addr %s395, 16
        %s397 = scalar_lea.vmem [#allocation5], %s396
        %p398 = pneg %p89
        %p399 = pneg %p86
        %s400 = sand.u32 %s28, 1
        %s401 = scalar_lea.sflag [#allocation6], %s400
        %s402 = sand.u32 %s102, 1
        %s403 = smul.addr %s402, 4
        %s404 = scalar_lea.vmem [#allocation7], %s403
        %p405 = pneg %p115
        %p406 = pneg %p112
        %s407 = sand.u32 %s28, 1
        %s408 = scalar_lea.sflag [#allocation9], %s407
        %s409 = sand.u32 %s128, 1
        %s410 = smul.addr %s409, 4
        %s411 = scalar_lea.vmem [#allocation8], %s410
        %p412 = pneg %p141
        %p413 = pneg %p138
        %s414 = sand.u32 %s28, 1
        %s415 = scalar_lea.sflag [#allocation9], %s414
        %s416 = sand.u32 %s154, 1
        %s417 = scalar_lea.vmem [#allocation10], %s416
        %p418 = pneg %p167
        %p419 = pneg %p164
        %p420 = pneg %p195
        %p421 = pneg %p192
        %s422 = sand.u32 %s182, 1
        %s423 = scalar_lea.sflag [#allocation4], %s422
        %s424 = sand.u32 %s182, 1
        %s425 = smul.addr %s424, 96
        %s426 = scalar_lea.vmem [#allocation11], %s425
        %s427 = smul.u32 12, %s33
        %s428 = smul.u32 12, %s33
        %v429 = vld [vmem:[%s355] sm:$0xf]
        %v430 = vld [vmem:[%s355 + $0x4] sm:$0xf]
        %v431 = vld [vmem:[%s355 + $0x8] sm:$0xf]
        %v432 = vld [vmem:[%s355 + $0xc] sm:$0xf]
        %v433 = vunpack.c.l.bf16 %v429
        %v434 = vunpack.c.l.bf16 %v430
        %v435 = vunpack.c.l.bf16 %v431
        %v436 = vunpack.c.l.bf16 %v432
        %v437 = vld [vmem:[%s364] sm:$0xf]
        %v438 = vld [vmem:[%s373] sm:$0xf]
        %v439 = vld [vmem:[%s346] sm:$0xf]
        %v440 = vld [vmem:[%s346 + $0x4] sm:$0xf]
        %v441 = vld [vmem:[%s346 + $0x8] sm:$0xf]
        %v442 = vld [vmem:[%s346 + $0xc] sm:$0xf]
        %v443 = vld [vmem:[%s346 + $0x10] sm:$0xf]
        %v444 = vld [vmem:[%s346 + $0x14] sm:$0xf]
        %v445 = vld [vmem:[%s346 + $0x18] sm:$0xf]
        %v446 = vld [vmem:[%s346 + $0x1c] sm:$0xf]
        %v447 = vld [vmem:[%s346 + $0x20] sm:$0xf]
        %v448 = vld [vmem:[%s346 + $0x24] sm:$0xf]
        %v449 = vld [vmem:[%s346 + $0x28] sm:$0xf]
        %v450 = vld [vmem:[%s346 + $0x2c] sm:$0xf]
        %v451 = vunpack.c.l.bf16 %v439
        %v452 = vunpack.c.l.bf16 %v440
        %v453 = vunpack.c.l.bf16 %v441
        %v454 = vunpack.c.l.bf16 %v442
        %v455 = vunpack.c.l.bf16 %v443
        %v456 = vunpack.c.l.bf16 %v444
        %v457 = vunpack.c.l.bf16 %v445
        %v458 = vunpack.c.l.bf16 %v446
        %v459 = vunpack.c.l.bf16 %v447
        %v460 = vunpack.c.l.bf16 %v448
        %v461 = vunpack.c.l.bf16 %v449
        %v462 = vunpack.c.l.bf16 %v450
        %v463 = vlaneseq
        %v464 = vshrl.u32 %v463, 7
        %v465 = vsub.s32 0, %v464
        %v466 = vrot.slane %v433, %v465
        %v467 = vmul.f32 %v451, %v466
        %v468 = vmul.f32 %v452, %v466
        %v469 = vmul.f32 %v453, %v466
        %v470 = vmul.f32 %v454, %v466
        %v471 = vmul.f32 %v455, %v466
        %v472 = vmul.f32 %v456, %v466
        %v473 = vmul.f32 %v457, %v466
        %v474 = vmul.f32 %v458, %v466
        %v475 = vmul.f32 %v459, %v466
        %v476 = vmul.f32 %v460, %v466
        %v477 = vmul.f32 %v461, %v466
        %v478 = vmul.f32 %v462, %v466
        %v479 = vlaneseq
        %v480 = vshrl.u32 %v479, 7
        %v481 = vsub.s32 0, %v480
        %v482 = vrot.slane %v437, %v481
        %v483 = vadd.f32 %v482, %v467
        %v484 = vadd.f32 %v482, %v468
        %v485 = vadd.f32 %v482, %v469
        %v486 = vadd.f32 %v482, %v470
        %v487 = vadd.f32 %v482, %v471
        %v488 = vadd.f32 %v482, %v472
        %v489 = vadd.f32 %v482, %v473
        %v490 = vadd.f32 %v482, %v474
        %v491 = vadd.f32 %v482, %v475
        %v492 = vadd.f32 %v482, %v476
        %v493 = vadd.f32 %v482, %v477
        %v494 = vadd.f32 %v482, %v478
        %v495 = vlaneseq
        %v496 = vshrl.u32 %v495, 7
        %v497 = vsub.s32 0, %v496
        %v498 = vrot.slane %v434, %v497
        %v499 = vmul.f32 %v451, %v498
        %v500 = vmul.f32 %v452, %v498
        %v501 = vmul.f32 %v453, %v498
        %v502 = vmul.f32 %v454, %v498
        %v503 = vmul.f32 %v455, %v498
        %v504 = vmul.f32 %v456, %v498
        %v505 = vmul.f32 %v457, %v498
        %v506 = vmul.f32 %v458, %v498
        %v507 = vmul.f32 %v459, %v498
        %v508 = vmul.f32 %v460, %v498
        %v509 = vmul.f32 %v461, %v498
        %v510 = vmul.f32 %v462, %v498
        %v511 = vlaneseq
        %v512 = vshrl.u32 %v511, 7
        %v513 = vsub.s32 1, %v512
        %v514 = vrot.slane %v437, %v513
        %v515 = vadd.f32 %v514, %v499
        %v516 = vadd.f32 %v514, %v500
        %v517 = vadd.f32 %v514, %v501
        %v518 = vadd.f32 %v514, %v502
        %v519 = vadd.f32 %v514, %v503
        %v520 = vadd.f32 %v514, %v504
        %v521 = vadd.f32 %v514, %v505
        %v522 = vadd.f32 %v514, %v506
        %v523 = vadd.f32 %v514, %v507
        %v524 = vadd.f32 %v514, %v508
        %v525 = vadd.f32 %v514, %v509
        %v526 = vadd.f32 %v514, %v510
        %v527 = vlaneseq
        %v528 = vshrl.u32 %v527, 7
        %v529 = vsub.s32 0, %v528
        %v530 = vrot.slane %v435, %v529
        %v531 = vmul.f32 %v451, %v530
        %v532 = vmul.f32 %v452, %v530
        %v533 = vmul.f32 %v453, %v530
        %v534 = vmul.f32 %v454, %v530
        %v535 = vmul.f32 %v455, %v530
        %v536 = vmul.f32 %v456, %v530
        %v537 = vmul.f32 %v457, %v530
        %v538 = vmul.f32 %v458, %v530
        %v539 = vmul.f32 %v459, %v530
        %v540 = vmul.f32 %v460, %v530
        %v541 = vmul.f32 %v461, %v530
        %v542 = vmul.f32 %v462, %v530
        %v543 = vlaneseq
        %v544 = vshrl.u32 %v543, 7
        %v545 = vsub.s32 2, %v544
        %v546 = vrot.slane %v437, %v545
        %v547 = vadd.f32 %v546, %v531
        %v548 = vadd.f32 %v546, %v532
        %v549 = vadd.f32 %v546, %v533
        %v550 = vadd.f32 %v546, %v534
        %v551 = vadd.f32 %v546, %v535
        %v552 = vadd.f32 %v546, %v536
        %v553 = vadd.f32 %v546, %v537
        %v554 = vadd.f32 %v546, %v538
        %v555 = vadd.f32 %v546, %v539
        %v556 = vadd.f32 %v546, %v540
        %v557 = vadd.f32 %v546, %v541
        %v558 = vadd.f32 %v546, %v542
        %v559 = vlaneseq
        %v560 = vshrl.u32 %v559, 7
        %v561 = vsub.s32 0, %v560
        %v562 = vrot.slane %v436, %v561
        %v563 = vmul.f32 %v451, %v562
        %v564 = vmul.f32 %v452, %v562
        %v565 = vmul.f32 %v453, %v562
        %v566 = vmul.f32 %v454, %v562
        %v567 = vmul.f32 %v455, %v562
        %v568 = vmul.f32 %v456, %v562
        %v569 = vmul.f32 %v457, %v562
        %v570 = vmul.f32 %v458, %v562
        %v571 = vmul.f32 %v459, %v562
        %v572 = vmul.f32 %v460, %v562
        %v573 = vmul.f32 %v461, %v562
        %v574 = vmul.f32 %v462, %v562
        %v575 = vlaneseq
        %v576 = vshrl.u32 %v575, 7
        %v577 = vsub.s32 3, %v576
        %v578 = vrot.slane %v437, %v577
        %v579 = vadd.f32 %v578, %v563
        %v580 = vadd.f32 %v578, %v564
        %v581 = vadd.f32 %v578, %v565
        %v582 = vadd.f32 %v578, %v566
        %v583 = vadd.f32 %v578, %v567
        %v584 = vadd.f32 %v578, %v568
        %v585 = vadd.f32 %v578, %v569
        %v586 = vadd.f32 %v578, %v570
        %v587 = vadd.f32 %v578, %v571
        %v588 = vadd.f32 %v578, %v572
        %v589 = vadd.f32 %v578, %v573
        %v590 = vadd.f32 %v578, %v574
        %s591 = scalar_lea.vmem %s346, 48 [#allocation2]
        %v592 = vld [vmem:[%s591] sm:$0xf]
        %v593 = vld [vmem:[%s591 + $0x4] sm:$0xf]
        %v594 = vld [vmem:[%s591 + $0x8] sm:$0xf]
        %v595 = vld [vmem:[%s591 + $0xc] sm:$0xf]
        %v596 = vld [vmem:[%s591 + $0x10] sm:$0xf]
        %v597 = vld [vmem:[%s591 + $0x14] sm:$0xf]
        %v598 = vld [vmem:[%s591 + $0x18] sm:$0xf]
        %v599 = vld [vmem:[%s591 + $0x1c] sm:$0xf]
        %v600 = vld [vmem:[%s591 + $0x20] sm:$0xf]
        %v601 = vld [vmem:[%s591 + $0x24] sm:$0xf]
        %v602 = vld [vmem:[%s591 + $0x28] sm:$0xf]
        %v603 = vld [vmem:[%s591 + $0x2c] sm:$0xf]
        %v604 = vunpack.c.l.bf16 %v592
        %v605 = vunpack.c.l.bf16 %v593
        %v606 = vunpack.c.l.bf16 %v594
        %v607 = vunpack.c.l.bf16 %v595
        %v608 = vunpack.c.l.bf16 %v596
        %v609 = vunpack.c.l.bf16 %v597
        %v610 = vunpack.c.l.bf16 %v598
        %v611 = vunpack.c.l.bf16 %v599
        %v612 = vunpack.c.l.bf16 %v600
        %v613 = vunpack.c.l.bf16 %v601
        %v614 = vunpack.c.l.bf16 %v602
        %v615 = vunpack.c.l.bf16 %v603
        %v616 = vlaneseq
        %v617 = vshrl.u32 %v616, 7
        %v618 = vsub.s32 1, %v617
        %v619 = vrot.slane %v433, %v618
        %v620 = vmul.f32 %v604, %v619
        %v621 = vmul.f32 %v605, %v619
        %v622 = vmul.f32 %v606, %v619
        %v623 = vmul.f32 %v607, %v619
        %v624 = vmul.f32 %v608, %v619
        %v625 = vmul.f32 %v609, %v619
        %v626 = vmul.f32 %v610, %v619
        %v627 = vmul.f32 %v611, %v619
        %v628 = vmul.f32 %v612, %v619
        %v629 = vmul.f32 %v613, %v619
        %v630 = vmul.f32 %v614, %v619
        %v631 = vmul.f32 %v615, %v619
        %v632 = vadd.f32 %v483, %v620
        %v633 = vadd.f32 %v484, %v621
        %v634 = vadd.f32 %v485, %v622
        %v635 = vadd.f32 %v486, %v623
        %v636 = vadd.f32 %v487, %v624
        %v637 = vadd.f32 %v488, %v625
        %v638 = vadd.f32 %v489, %v626
        %v639 = vadd.f32 %v490, %v627
        %v640 = vadd.f32 %v491, %v628
        %v641 = vadd.f32 %v492, %v629
        %v642 = vadd.f32 %v493, %v630
        %v643 = vadd.f32 %v494, %v631
        %v644 = vlaneseq
        %v645 = vshrl.u32 %v644, 7
        %v646 = vsub.s32 1, %v645
        %v647 = vrot.slane %v434, %v646
        %v648 = vmul.f32 %v604, %v647
        %v649 = vmul.f32 %v605, %v647
        %v650 = vmul.f32 %v606, %v647
        %v651 = vmul.f32 %v607, %v647
        %v652 = vmul.f32 %v608, %v647
        %v653 = vmul.f32 %v609, %v647
        %v654 = vmul.f32 %v610, %v647
        %v655 = vmul.f32 %v611, %v647
        %v656 = vmul.f32 %v612, %v647
        %v657 = vmul.f32 %v613, %v647
        %v658 = vmul.f32 %v614, %v647
        %v659 = vmul.f32 %v615, %v647
        %v660 = vadd.f32 %v515, %v648
        %v661 = vadd.f32 %v516, %v649
        %v662 = vadd.f32 %v517, %v650
        %v663 = vadd.f32 %v518, %v651
        %v664 = vadd.f32 %v519, %v652
        %v665 = vadd.f32 %v520, %v653
        %v666 = vadd.f32 %v521, %v654
        %v667 = vadd.f32 %v522, %v655
        %v668 = vadd.f32 %v523, %v656
        %v669 = vadd.f32 %v524, %v657
        %v670 = vadd.f32 %v525, %v658
        %v671 = vadd.f32 %v526, %v659
        %v672 = vlaneseq
        %v673 = vshrl.u32 %v672, 7
        %v674 = vsub.s32 1, %v673
        %v675 = vrot.slane %v435, %v674
        %v676 = vmul.f32 %v604, %v675
        %v677 = vmul.f32 %v605, %v675
        %v678 = vmul.f32 %v606, %v675
        %v679 = vmul.f32 %v607, %v675
        %v680 = vmul.f32 %v608, %v675
        %v681 = vmul.f32 %v609, %v675
        %v682 = vmul.f32 %v610, %v675
        %v683 = vmul.f32 %v611, %v675
        %v684 = vmul.f32 %v612, %v675
        %v685 = vmul.f32 %v613, %v675
        %v686 = vmul.f32 %v614, %v675
        %v687 = vmul.f32 %v615, %v675
        %v688 = vadd.f32 %v547, %v676
        %v689 = vadd.f32 %v548, %v677
        %v690 = vadd.f32 %v549, %v678
        %v691 = vadd.f32 %v550, %v679
        %v692 = vadd.f32 %v551, %v680
        %v693 = vadd.f32 %v552, %v681
        %v694 = vadd.f32 %v553, %v682
        %v695 = vadd.f32 %v554, %v683
        %v696 = vadd.f32 %v555, %v684
        %v697 = vadd.f32 %v556, %v685
        %v698 = vadd.f32 %v557, %v686
        %v699 = vadd.f32 %v558, %v687
        %v700 = vlaneseq
        %v701 = vshrl.u32 %v700, 7
        %v702 = vsub.s32 1, %v701
        %v703 = vrot.slane %v436, %v702
        %v704 = vmul.f32 %v604, %v703
        %v705 = vmul.f32 %v605, %v703
        %v706 = vmul.f32 %v606, %v703
        %v707 = vmul.f32 %v607, %v703
        %v708 = vmul.f32 %v608, %v703
        %v709 = vmul.f32 %v609, %v703
        %v710 = vmul.f32 %v610, %v703
        %v711 = vmul.f32 %v611, %v703
        %v712 = vmul.f32 %v612, %v703
        %v713 = vmul.f32 %v613, %v703
        %v714 = vmul.f32 %v614, %v703
        %v715 = vmul.f32 %v615, %v703
        %v716 = vadd.f32 %v579, %v704
        %v717 = vadd.f32 %v580, %v705
        %v718 = vadd.f32 %v581, %v706
        %v719 = vadd.f32 %v582, %v707
        %v720 = vadd.f32 %v583, %v708
        %v721 = vadd.f32 %v584, %v709
        %v722 = vadd.f32 %v585, %v710
        %v723 = vadd.f32 %v586, %v711
        %v724 = vadd.f32 %v587, %v712
        %v725 = vadd.f32 %v588, %v713
        %v726 = vadd.f32 %v589, %v714
        %v727 = vadd.f32 %v590, %v715
        %s728 = scalar_lea.vmem %s346, 96 [#allocation2]
        %v729 = vld [vmem:[%s728] sm:$0xf]
        %v730 = vld [vmem:[%s728 + $0x4] sm:$0xf]
        %v731 = vld [vmem:[%s728 + $0x8] sm:$0xf]
        %v732 = vld [vmem:[%s728 + $0xc] sm:$0xf]
        %v733 = vld [vmem:[%s728 + $0x10] sm:$0xf]
        %v734 = vld [vmem:[%s728 + $0x14] sm:$0xf]
        %v735 = vld [vmem:[%s728 + $0x18] sm:$0xf]
        %v736 = vld [vmem:[%s728 + $0x1c] sm:$0xf]
        %v737 = vld [vmem:[%s728 + $0x20] sm:$0xf]
        %v738 = vld [vmem:[%s728 + $0x24] sm:$0xf]
        %v739 = vld [vmem:[%s728 + $0x28] sm:$0xf]
        %v740 = vld [vmem:[%s728 + $0x2c] sm:$0xf]
        %v741 = vunpack.c.l.bf16 %v729
        %v742 = vunpack.c.l.bf16 %v730
        %v743 = vunpack.c.l.bf16 %v731
        %v744 = vunpack.c.l.bf16 %v732
        %v745 = vunpack.c.l.bf16 %v733
        %v746 = vunpack.c.l.bf16 %v734
        %v747 = vunpack.c.l.bf16 %v735
        %v748 = vunpack.c.l.bf16 %v736
        %v749 = vunpack.c.l.bf16 %v737
        %v750 = vunpack.c.l.bf16 %v738
        %v751 = vunpack.c.l.bf16 %v739
        %v752 = vunpack.c.l.bf16 %v740
        %v753 = vlaneseq
        %v754 = vshrl.u32 %v753, 7
        %v755 = vsub.s32 2, %v754
        %v756 = vrot.slane %v433, %v755
        %v757 = vmul.f32 %v741, %v756
        %v758 = vmul.f32 %v742, %v756
        %v759 = vmul.f32 %v743, %v756
        %v760 = vmul.f32 %v744, %v756
        %v761 = vmul.f32 %v745, %v756
        %v762 = vmul.f32 %v746, %v756
        %v763 = vmul.f32 %v747, %v756
        %v764 = vmul.f32 %v748, %v756
        %v765 = vmul.f32 %v749, %v756
        %v766 = vmul.f32 %v750, %v756
        %v767 = vmul.f32 %v751, %v756
        %v768 = vmul.f32 %v752, %v756
        %v769 = vadd.f32 %v632, %v757
        %v770 = vadd.f32 %v633, %v758
        %v771 = vadd.f32 %v634, %v759
        %v772 = vadd.f32 %v635, %v760
        %v773 = vadd.f32 %v636, %v761
        %v774 = vadd.f32 %v637, %v762
        %v775 = vadd.f32 %v638, %v763
        %v776 = vadd.f32 %v639, %v764
        %v777 = vadd.f32 %v640, %v765
        %v778 = vadd.f32 %v641, %v766
        %v779 = vadd.f32 %v642, %v767
        %v780 = vadd.f32 %v643, %v768
        %v781 = vlaneseq
        %v782 = vshrl.u32 %v781, 7
        %v783 = vsub.s32 2, %v782
        %v784 = vrot.slane %v434, %v783
        %v785 = vmul.f32 %v741, %v784
        %v786 = vmul.f32 %v742, %v784
        %v787 = vmul.f32 %v743, %v784
        %v788 = vmul.f32 %v744, %v784
        %v789 = vmul.f32 %v745, %v784
        %v790 = vmul.f32 %v746, %v784
        %v791 = vmul.f32 %v747, %v784
        %v792 = vmul.f32 %v748, %v784
        %v793 = vmul.f32 %v749, %v784
        %v794 = vmul.f32 %v750, %v784
        %v795 = vmul.f32 %v751, %v784
        %v796 = vmul.f32 %v752, %v784
        %v797 = vadd.f32 %v660, %v785
        %v798 = vadd.f32 %v661, %v786
        %v799 = vadd.f32 %v662, %v787
        %v800 = vadd.f32 %v663, %v788
        %v801 = vadd.f32 %v664, %v789
        %v802 = vadd.f32 %v665, %v790
        %v803 = vadd.f32 %v666, %v791
        %v804 = vadd.f32 %v667, %v792
        %v805 = vadd.f32 %v668, %v793
        %v806 = vadd.f32 %v669, %v794
        %v807 = vadd.f32 %v670, %v795
        %v808 = vadd.f32 %v671, %v796
        %v809 = vlaneseq
        %v810 = vshrl.u32 %v809, 7
        %v811 = vsub.s32 2, %v810
        %v812 = vrot.slane %v435, %v811
        %v813 = vmul.f32 %v741, %v812
        %v814 = vmul.f32 %v742, %v812
        %v815 = vmul.f32 %v743, %v812
        %v816 = vmul.f32 %v744, %v812
        %v817 = vmul.f32 %v745, %v812
        %v818 = vmul.f32 %v746, %v812
        %v819 = vmul.f32 %v747, %v812
        %v820 = vmul.f32 %v748, %v812
        %v821 = vmul.f32 %v749, %v812
        %v822 = vmul.f32 %v750, %v812
        %v823 = vmul.f32 %v751, %v812
        %v824 = vmul.f32 %v752, %v812
        %v825 = vadd.f32 %v688, %v813
        %v826 = vadd.f32 %v689, %v814
        %v827 = vadd.f32 %v690, %v815
        %v828 = vadd.f32 %v691, %v816
        %v829 = vadd.f32 %v692, %v817
        %v830 = vadd.f32 %v693, %v818
        %v831 = vadd.f32 %v694, %v819
        %v832 = vadd.f32 %v695, %v820
        %v833 = vadd.f32 %v696, %v821
        %v834 = vadd.f32 %v697, %v822
        %v835 = vadd.f32 %v698, %v823
        %v836 = vadd.f32 %v699, %v824
        %v837 = vlaneseq
        %v838 = vshrl.u32 %v837, 7
        %v839 = vsub.s32 2, %v838
        %v840 = vrot.slane %v436, %v839
        %v841 = vmul.f32 %v741, %v840
        %v842 = vmul.f32 %v742, %v840
        %v843 = vmul.f32 %v743, %v840
        %v844 = vmul.f32 %v744, %v840
        %v845 = vmul.f32 %v745, %v840
        %v846 = vmul.f32 %v746, %v840
        %v847 = vmul.f32 %v747, %v840
        %v848 = vmul.f32 %v748, %v840
        %v849 = vmul.f32 %v749, %v840
        %v850 = vmul.f32 %v750, %v840
        %v851 = vmul.f32 %v751, %v840
        %v852 = vmul.f32 %v752, %v840
        %v853 = vadd.f32 %v716, %v841
        %v854 = vadd.f32 %v717, %v842
        %v855 = vadd.f32 %v718, %v843
        %v856 = vadd.f32 %v719, %v844
        %v857 = vadd.f32 %v720, %v845
        %v858 = vadd.f32 %v721, %v846
        %v859 = vadd.f32 %v722, %v847
        %v860 = vadd.f32 %v723, %v848
        %v861 = vadd.f32 %v724, %v849
        %v862 = vadd.f32 %v725, %v850
        %v863 = vadd.f32 %v726, %v851
        %v864 = vadd.f32 %v727, %v852
        %s865 = scalar_lea.vmem %s346, 144 [#allocation2]
        %v866 = vld [vmem:[%s865] sm:$0xf]
        %v867 = vld [vmem:[%s865 + $0x4] sm:$0xf]
        %v868 = vld [vmem:[%s865 + $0x8] sm:$0xf]
        %v869 = vld [vmem:[%s865 + $0xc] sm:$0xf]
        %v870 = vld [vmem:[%s865 + $0x10] sm:$0xf]
        %v871 = vld [vmem:[%s865 + $0x14] sm:$0xf]
        %v872 = vld [vmem:[%s865 + $0x18] sm:$0xf]
        %v873 = vld [vmem:[%s865 + $0x1c] sm:$0xf]
        %v874 = vld [vmem:[%s865 + $0x20] sm:$0xf]
        %v875 = vld [vmem:[%s865 + $0x24] sm:$0xf]
        %v876 = vld [vmem:[%s865 + $0x28] sm:$0xf]
        %v877 = vld [vmem:[%s865 + $0x2c] sm:$0xf]
        %v878 = vunpack.c.l.bf16 %v866
        %v879 = vunpack.c.l.bf16 %v867
        %v880 = vunpack.c.l.bf16 %v868
        %v881 = vunpack.c.l.bf16 %v869
        %v882 = vunpack.c.l.bf16 %v870
        %v883 = vunpack.c.l.bf16 %v871
        %v884 = vunpack.c.l.bf16 %v872
        %v885 = vunpack.c.l.bf16 %v873
        %v886 = vunpack.c.l.bf16 %v874
        %v887 = vunpack.c.l.bf16 %v875
        %v888 = vunpack.c.l.bf16 %v876
        %v889 = vunpack.c.l.bf16 %v877
        %v890 = vlaneseq
        %v891 = vshrl.u32 %v890, 7
        %v892 = vsub.s32 3, %v891
        %v893 = vrot.slane %v433, %v892
        %v894 = vmul.f32 %v878, %v893
        %v895 = vmul.f32 %v879, %v893
        %v896 = vmul.f32 %v880, %v893
        %v897 = vmul.f32 %v881, %v893
        %v898 = vmul.f32 %v882, %v893
        %v899 = vmul.f32 %v883, %v893
        %v900 = vmul.f32 %v884, %v893
        %v901 = vmul.f32 %v885, %v893
        %v902 = vmul.f32 %v886, %v893
        %v903 = vmul.f32 %v887, %v893
        %v904 = vmul.f32 %v888, %v893
        %v905 = vmul.f32 %v889, %v893
        %v906 = vadd.f32 %v769, %v894
        %v907 = vadd.f32 %v770, %v895
        %v908 = vadd.f32 %v771, %v896
        %v909 = vadd.f32 %v772, %v897
        %v910 = vadd.f32 %v773, %v898
        %v911 = vadd.f32 %v774, %v899
        %v912 = vadd.f32 %v775, %v900
        %v913 = vadd.f32 %v776, %v901
        %v914 = vadd.f32 %v777, %v902
        %v915 = vadd.f32 %v778, %v903
        %v916 = vadd.f32 %v779, %v904
        %v917 = vadd.f32 %v780, %v905
        %v918 = vlaneseq
        %v919 = vshrl.u32 %v918, 7
        %v920 = vsub.s32 3, %v919
        %v921 = vrot.slane %v434, %v920
        %v922 = vmul.f32 %v878, %v921
        %v923 = vmul.f32 %v879, %v921
        %v924 = vmul.f32 %v880, %v921
        %v925 = vmul.f32 %v881, %v921
        %v926 = vmul.f32 %v882, %v921
        %v927 = vmul.f32 %v883, %v921
        %v928 = vmul.f32 %v884, %v921
        %v929 = vmul.f32 %v885, %v921
        %v930 = vmul.f32 %v886, %v921
        %v931 = vmul.f32 %v887, %v921
        %v932 = vmul.f32 %v888, %v921
        %v933 = vmul.f32 %v889, %v921
        %v934 = vadd.f32 %v797, %v922
        %v935 = vadd.f32 %v798, %v923
        %v936 = vadd.f32 %v799, %v924
        %v937 = vadd.f32 %v800, %v925
        %v938 = vadd.f32 %v801, %v926
        %v939 = vadd.f32 %v802, %v927
        %v940 = vadd.f32 %v803, %v928
        %v941 = vadd.f32 %v804, %v929
        %v942 = vadd.f32 %v805, %v930
        %v943 = vadd.f32 %v806, %v931
        %v944 = vadd.f32 %v807, %v932
        %v945 = vadd.f32 %v808, %v933
        %v946 = vlaneseq
        %v947 = vshrl.u32 %v946, 7
        %v948 = vsub.s32 3, %v947
        %v949 = vrot.slane %v435, %v948
        %v950 = vmul.f32 %v878, %v949
        %v951 = vmul.f32 %v879, %v949
        %v952 = vmul.f32 %v880, %v949
        %v953 = vmul.f32 %v881, %v949
        %v954 = vmul.f32 %v882, %v949
        %v955 = vmul.f32 %v883, %v949
        %v956 = vmul.f32 %v884, %v949
        %v957 = vmul.f32 %v885, %v949
        %v958 = vmul.f32 %v886, %v949
        %v959 = vmul.f32 %v887, %v949
        %v960 = vmul.f32 %v888, %v949
        %v961 = vmul.f32 %v889, %v949
        %v962 = vadd.f32 %v825, %v950
        %v963 = vadd.f32 %v826, %v951
        %v964 = vadd.f32 %v827, %v952
        %v965 = vadd.f32 %v828, %v953
        %v966 = vadd.f32 %v829, %v954
        %v967 = vadd.f32 %v830, %v955
        %v968 = vadd.f32 %v831, %v956
        %v969 = vadd.f32 %v832, %v957
        %v970 = vadd.f32 %v833, %v958
        %v971 = vadd.f32 %v834, %v959
        %v972 = vadd.f32 %v835, %v960
        %v973 = vadd.f32 %v836, %v961
        %v974 = vlaneseq
        %v975 = vshrl.u32 %v974, 7
        %v976 = vsub.s32 3, %v975
        %v977 = vrot.slane %v436, %v976
        %v978 = vmul.f32 %v878, %v977
        %v979 = vmul.f32 %v879, %v977
        %v980 = vmul.f32 %v880, %v977
        %v981 = vmul.f32 %v881, %v977
        %v982 = vmul.f32 %v882, %v977
        %v983 = vmul.f32 %v883, %v977
        %v984 = vmul.f32 %v884, %v977
        %v985 = vmul.f32 %v885, %v977
        %v986 = vmul.f32 %v886, %v977
        %v987 = vmul.f32 %v887, %v977
        %v988 = vmul.f32 %v888, %v977
        %v989 = vmul.f32 %v889, %v977
        %v990 = vadd.f32 %v853, %v978
        %v991 = vadd.f32 %v854, %v979
        %v992 = vadd.f32 %v855, %v980
        %v993 = vadd.f32 %v856, %v981
        %v994 = vadd.f32 %v857, %v982
        %v995 = vadd.f32 %v858, %v983
        %v996 = vadd.f32 %v859, %v984
        %v997 = vadd.f32 %v860, %v985
        %v998 = vadd.f32 %v861, %v986
        %v999 = vadd.f32 %v862, %v987
        %v1000 = vadd.f32 %v863, %v988
        %v1001 = vadd.f32 %v864, %v989
        %s1002 = scalar_lea.vmem %s346, 192 [#allocation2]
        %v1003 = vld [vmem:[%s1002] sm:$0xf]
        %v1004 = vld [vmem:[%s1002 + $0x4] sm:$0xf]
        %v1005 = vld [vmem:[%s1002 + $0x8] sm:$0xf]
        %v1006 = vld [vmem:[%s1002 + $0xc] sm:$0xf]
        %v1007 = vld [vmem:[%s1002 + $0x10] sm:$0xf]
        %v1008 = vld [vmem:[%s1002 + $0x14] sm:$0xf]
        %v1009 = vld [vmem:[%s1002 + $0x18] sm:$0xf]
        %v1010 = vld [vmem:[%s1002 + $0x1c] sm:$0xf]
        %v1011 = vld [vmem:[%s1002 + $0x20] sm:$0xf]
        %v1012 = vld [vmem:[%s1002 + $0x24] sm:$0xf]
        %v1013 = vld [vmem:[%s1002 + $0x28] sm:$0xf]
        %v1014 = vld [vmem:[%s1002 + $0x2c] sm:$0xf]
        %v1015 = vunpack.c.l.bf16 %v1003
        %v1016 = vunpack.c.l.bf16 %v1004
        %v1017 = vunpack.c.l.bf16 %v1005
        %v1018 = vunpack.c.l.bf16 %v1006
        %v1019 = vunpack.c.l.bf16 %v1007
        %v1020 = vunpack.c.l.bf16 %v1008
        %v1021 = vunpack.c.l.bf16 %v1009
        %v1022 = vunpack.c.l.bf16 %v1010
        %v1023 = vunpack.c.l.bf16 %v1011
        %v1024 = vunpack.c.l.bf16 %v1012
        %v1025 = vunpack.c.l.bf16 %v1013
        %v1026 = vunpack.c.l.bf16 %v1014
        %v1027 = vlaneseq
        %v1028 = vshrl.u32 %v1027, 7
        %v1029 = vsub.s32 4, %v1028
        %v1030 = vrot.slane %v433, %v1029
        %v1031 = vmul.f32 %v1015, %v1030
        %v1032 = vmul.f32 %v1016, %v1030
        %v1033 = vmul.f32 %v1017, %v1030
        %v1034 = vmul.f32 %v1018, %v1030
        %v1035 = vmul.f32 %v1019, %v1030
        %v1036 = vmul.f32 %v1020, %v1030
        %v1037 = vmul.f32 %v1021, %v1030
        %v1038 = vmul.f32 %v1022, %v1030
        %v1039 = vmul.f32 %v1023, %v1030
        %v1040 = vmul.f32 %v1024, %v1030
        %v1041 = vmul.f32 %v1025, %v1030
        %v1042 = vmul.f32 %v1026, %v1030
        %v1043 = vadd.f32 %v906, %v1031
        %v1044 = vadd.f32 %v907, %v1032
        %v1045 = vadd.f32 %v908, %v1033
        %v1046 = vadd.f32 %v909, %v1034
        %v1047 = vadd.f32 %v910, %v1035
        %v1048 = vadd.f32 %v911, %v1036
        %v1049 = vadd.f32 %v912, %v1037
        %v1050 = vadd.f32 %v913, %v1038
        %v1051 = vadd.f32 %v914, %v1039
        %v1052 = vadd.f32 %v915, %v1040
        %v1053 = vadd.f32 %v916, %v1041
        %v1054 = vadd.f32 %v917, %v1042
        %v1055 = vlaneseq
        %v1056 = vshrl.u32 %v1055, 7
        %v1057 = vsub.s32 4, %v1056
        %v1058 = vrot.slane %v434, %v1057
        %v1059 = vmul.f32 %v1015, %v1058
        %v1060 = vmul.f32 %v1016, %v1058
        %v1061 = vmul.f32 %v1017, %v1058
        %v1062 = vmul.f32 %v1018, %v1058
        %v1063 = vmul.f32 %v1019, %v1058
        %v1064 = vmul.f32 %v1020, %v1058
        %v1065 = vmul.f32 %v1021, %v1058
        %v1066 = vmul.f32 %v1022, %v1058
        %v1067 = vmul.f32 %v1023, %v1058
        %v1068 = vmul.f32 %v1024, %v1058
        %v1069 = vmul.f32 %v1025, %v1058
        %v1070 = vmul.f32 %v1026, %v1058
        %v1071 = vadd.f32 %v934, %v1059
        %v1072 = vadd.f32 %v935, %v1060
        %v1073 = vadd.f32 %v936, %v1061
        %v1074 = vadd.f32 %v937, %v1062
        %v1075 = vadd.f32 %v938, %v1063
        %v1076 = vadd.f32 %v939, %v1064
        %v1077 = vadd.f32 %v940, %v1065
        %v1078 = vadd.f32 %v941, %v1066
        %v1079 = vadd.f32 %v942, %v1067
        %v1080 = vadd.f32 %v943, %v1068
        %v1081 = vadd.f32 %v944, %v1069
        %v1082 = vadd.f32 %v945, %v1070
        %v1083 = vlaneseq
        %v1084 = vshrl.u32 %v1083, 7
        %v1085 = vsub.s32 4, %v1084
        %v1086 = vrot.slane %v435, %v1085
        %v1087 = vmul.f32 %v1015, %v1086
        %v1088 = vmul.f32 %v1016, %v1086
        %v1089 = vmul.f32 %v1017, %v1086
        %v1090 = vmul.f32 %v1018, %v1086
        %v1091 = vmul.f32 %v1019, %v1086
        %v1092 = vmul.f32 %v1020, %v1086
        %v1093 = vmul.f32 %v1021, %v1086
        %v1094 = vmul.f32 %v1022, %v1086
        %v1095 = vmul.f32 %v1023, %v1086
        %v1096 = vmul.f32 %v1024, %v1086
        %v1097 = vmul.f32 %v1025, %v1086
        %v1098 = vmul.f32 %v1026, %v1086
        %v1099 = vadd.f32 %v962, %v1087
        %v1100 = vadd.f32 %v963, %v1088
        %v1101 = vadd.f32 %v964, %v1089
        %v1102 = vadd.f32 %v965, %v1090
        %v1103 = vadd.f32 %v966, %v1091
        %v1104 = vadd.f32 %v967, %v1092
        %v1105 = vadd.f32 %v968, %v1093
        %v1106 = vadd.f32 %v969, %v1094
        %v1107 = vadd.f32 %v970, %v1095
        %v1108 = vadd.f32 %v971, %v1096
        %v1109 = vadd.f32 %v972, %v1097
        %v1110 = vadd.f32 %v973, %v1098
        %v1111 = vlaneseq
        %v1112 = vshrl.u32 %v1111, 7
        %v1113 = vsub.s32 4, %v1112
        %v1114 = vrot.slane %v436, %v1113
        %v1115 = vmul.f32 %v1015, %v1114
        %v1116 = vmul.f32 %v1016, %v1114
        %v1117 = vmul.f32 %v1017, %v1114
        %v1118 = vmul.f32 %v1018, %v1114
        %v1119 = vmul.f32 %v1019, %v1114
        %v1120 = vmul.f32 %v1020, %v1114
        %v1121 = vmul.f32 %v1021, %v1114
        %v1122 = vmul.f32 %v1022, %v1114
        %v1123 = vmul.f32 %v1023, %v1114
        %v1124 = vmul.f32 %v1024, %v1114
        %v1125 = vmul.f32 %v1025, %v1114
        %v1126 = vmul.f32 %v1026, %v1114
        %v1127 = vadd.f32 %v990, %v1115
        %v1128 = vadd.f32 %v991, %v1116
        %v1129 = vadd.f32 %v992, %v1117
        %v1130 = vadd.f32 %v993, %v1118
        %v1131 = vadd.f32 %v994, %v1119
        %v1132 = vadd.f32 %v995, %v1120
        %v1133 = vadd.f32 %v996, %v1121
        %v1134 = vadd.f32 %v997, %v1122
        %v1135 = vadd.f32 %v998, %v1123
        %v1136 = vadd.f32 %v999, %v1124
        %v1137 = vadd.f32 %v1000, %v1125
        %v1138 = vadd.f32 %v1001, %v1126
        %s1139 = scalar_lea.vmem %s346, 240 [#allocation2]
        %v1140 = vld [vmem:[%s1139] sm:$0xf]
        %v1141 = vld [vmem:[%s1139 + $0x4] sm:$0xf]
        %v1142 = vld [vmem:[%s1139 + $0x8] sm:$0xf]
        %v1143 = vld [vmem:[%s1139 + $0xc] sm:$0xf]
        %v1144 = vld [vmem:[%s1139 + $0x10] sm:$0xf]
        %v1145 = vld [vmem:[%s1139 + $0x14] sm:$0xf]
        %v1146 = vld [vmem:[%s1139 + $0x18] sm:$0xf]
        %v1147 = vld [vmem:[%s1139 + $0x1c] sm:$0xf]
        %v1148 = vld [vmem:[%s1139 + $0x20] sm:$0xf]
        %v1149 = vld [vmem:[%s1139 + $0x24] sm:$0xf]
        %v1150 = vld [vmem:[%s1139 + $0x28] sm:$0xf]
        %v1151 = vld [vmem:[%s1139 + $0x2c] sm:$0xf]
        %v1152 = vunpack.c.l.bf16 %v1140
        %v1153 = vunpack.c.l.bf16 %v1141
        %v1154 = vunpack.c.l.bf16 %v1142
        %v1155 = vunpack.c.l.bf16 %v1143
        %v1156 = vunpack.c.l.bf16 %v1144
        %v1157 = vunpack.c.l.bf16 %v1145
        %v1158 = vunpack.c.l.bf16 %v1146
        %v1159 = vunpack.c.l.bf16 %v1147
        %v1160 = vunpack.c.l.bf16 %v1148
        %v1161 = vunpack.c.l.bf16 %v1149
        %v1162 = vunpack.c.l.bf16 %v1150
        %v1163 = vunpack.c.l.bf16 %v1151
        %v1164 = vlaneseq
        %v1165 = vshrl.u32 %v1164, 7
        %v1166 = vsub.s32 5, %v1165
        %v1167 = vrot.slane %v433, %v1166
        %v1168 = vmul.f32 %v1152, %v1167
        %v1169 = vmul.f32 %v1153, %v1167
        %v1170 = vmul.f32 %v1154, %v1167
        %v1171 = vmul.f32 %v1155, %v1167
        %v1172 = vmul.f32 %v1156, %v1167
        %v1173 = vmul.f32 %v1157, %v1167
        %v1174 = vmul.f32 %v1158, %v1167
        %v1175 = vmul.f32 %v1159, %v1167
        %v1176 = vmul.f32 %v1160, %v1167
        %v1177 = vmul.f32 %v1161, %v1167
        %v1178 = vmul.f32 %v1162, %v1167
        %v1179 = vmul.f32 %v1163, %v1167
        %v1180 = vadd.f32 %v1043, %v1168
        %v1181 = vadd.f32 %v1044, %v1169
        %v1182 = vadd.f32 %v1045, %v1170
        %v1183 = vadd.f32 %v1046, %v1171
        %v1184 = vadd.f32 %v1047, %v1172
        %v1185 = vadd.f32 %v1048, %v1173
        %v1186 = vadd.f32 %v1049, %v1174
        %v1187 = vadd.f32 %v1050, %v1175
        %v1188 = vadd.f32 %v1051, %v1176
        %v1189 = vadd.f32 %v1052, %v1177
        %v1190 = vadd.f32 %v1053, %v1178
        %v1191 = vadd.f32 %v1054, %v1179
        %v1192 = vlaneseq
        %v1193 = vshrl.u32 %v1192, 7
        %v1194 = vsub.s32 5, %v1193
        %v1195 = vrot.slane %v434, %v1194
        %v1196 = vmul.f32 %v1152, %v1195
        %v1197 = vmul.f32 %v1153, %v1195
        %v1198 = vmul.f32 %v1154, %v1195
        %v1199 = vmul.f32 %v1155, %v1195
        %v1200 = vmul.f32 %v1156, %v1195
        %v1201 = vmul.f32 %v1157, %v1195
        %v1202 = vmul.f32 %v1158, %v1195
        %v1203 = vmul.f32 %v1159, %v1195
        %v1204 = vmul.f32 %v1160, %v1195
        %v1205 = vmul.f32 %v1161, %v1195
        %v1206 = vmul.f32 %v1162, %v1195
        %v1207 = vmul.f32 %v1163, %v1195
        %v1208 = vadd.f32 %v1071, %v1196
        %v1209 = vadd.f32 %v1072, %v1197
        %v1210 = vadd.f32 %v1073, %v1198
        %v1211 = vadd.f32 %v1074, %v1199
        %v1212 = vadd.f32 %v1075, %v1200
        %v1213 = vadd.f32 %v1076, %v1201
        %v1214 = vadd.f32 %v1077, %v1202
        %v1215 = vadd.f32 %v1078, %v1203
        %v1216 = vadd.f32 %v1079, %v1204
        %v1217 = vadd.f32 %v1080, %v1205
        %v1218 = vadd.f32 %v1081, %v1206
        %v1219 = vadd.f32 %v1082, %v1207
        %v1220 = vlaneseq
        %v1221 = vshrl.u32 %v1220, 7
        %v1222 = vsub.s32 5, %v1221
        %v1223 = vrot.slane %v435, %v1222
        %v1224 = vmul.f32 %v1152, %v1223
        %v1225 = vmul.f32 %v1153, %v1223
        %v1226 = vmul.f32 %v1154, %v1223
        %v1227 = vmul.f32 %v1155, %v1223
        %v1228 = vmul.f32 %v1156, %v1223
        %v1229 = vmul.f32 %v1157, %v1223
        %v1230 = vmul.f32 %v1158, %v1223
        %v1231 = vmul.f32 %v1159, %v1223
        %v1232 = vmul.f32 %v1160, %v1223
        %v1233 = vmul.f32 %v1161, %v1223
        %v1234 = vmul.f32 %v1162, %v1223
        %v1235 = vmul.f32 %v1163, %v1223
        %v1236 = vadd.f32 %v1099, %v1224
        %v1237 = vadd.f32 %v1100, %v1225
        %v1238 = vadd.f32 %v1101, %v1226
        %v1239 = vadd.f32 %v1102, %v1227
        %v1240 = vadd.f32 %v1103, %v1228
        %v1241 = vadd.f32 %v1104, %v1229
        %v1242 = vadd.f32 %v1105, %v1230
        %v1243 = vadd.f32 %v1106, %v1231
        %v1244 = vadd.f32 %v1107, %v1232
        %v1245 = vadd.f32 %v1108, %v1233
        %v1246 = vadd.f32 %v1109, %v1234
        %v1247 = vadd.f32 %v1110, %v1235
        %v1248 = vlaneseq
        %v1249 = vshrl.u32 %v1248, 7
        %v1250 = vsub.s32 5, %v1249
        %v1251 = vrot.slane %v436, %v1250
        %v1252 = vmul.f32 %v1152, %v1251
        %v1253 = vmul.f32 %v1153, %v1251
        %v1254 = vmul.f32 %v1154, %v1251
        %v1255 = vmul.f32 %v1155, %v1251
        %v1256 = vmul.f32 %v1156, %v1251
        %v1257 = vmul.f32 %v1157, %v1251
        %v1258 = vmul.f32 %v1158, %v1251
        %v1259 = vmul.f32 %v1159, %v1251
        %v1260 = vmul.f32 %v1160, %v1251
        %v1261 = vmul.f32 %v1161, %v1251
        %v1262 = vmul.f32 %v1162, %v1251
        %v1263 = vmul.f32 %v1163, %v1251
        %v1264 = vadd.f32 %v1127, %v1252
        %v1265 = vadd.f32 %v1128, %v1253
        %v1266 = vadd.f32 %v1129, %v1254
        %v1267 = vadd.f32 %v1130, %v1255
        %v1268 = vadd.f32 %v1131, %v1256
        %v1269 = vadd.f32 %v1132, %v1257
        %v1270 = vadd.f32 %v1133, %v1258
        %v1271 = vadd.f32 %v1134, %v1259
        %v1272 = vadd.f32 %v1135, %v1260
        %v1273 = vadd.f32 %v1136, %v1261
        %v1274 = vadd.f32 %v1137, %v1262
        %v1275 = vadd.f32 %v1138, %v1263
        %s1276 = scalar_lea.vmem %s346, 288 [#allocation2]
        %v1277 = vld [vmem:[%s1276] sm:$0xf]
        %v1278 = vld [vmem:[%s1276 + $0x4] sm:$0xf]
        %v1279 = vld [vmem:[%s1276 + $0x8] sm:$0xf]
        %v1280 = vld [vmem:[%s1276 + $0xc] sm:$0xf]
        %v1281 = vld [vmem:[%s1276 + $0x10] sm:$0xf]
        %v1282 = vld [vmem:[%s1276 + $0x14] sm:$0xf]
        %v1283 = vld [vmem:[%s1276 + $0x18] sm:$0xf]
        %v1284 = vld [vmem:[%s1276 + $0x1c] sm:$0xf]
        %v1285 = vld [vmem:[%s1276 + $0x20] sm:$0xf]
        %v1286 = vld [vmem:[%s1276 + $0x24] sm:$0xf]
        %v1287 = vld [vmem:[%s1276 + $0x28] sm:$0xf]
        %v1288 = vld [vmem:[%s1276 + $0x2c] sm:$0xf]
        %v1289 = vunpack.c.l.bf16 %v1277
        %v1290 = vunpack.c.l.bf16 %v1278
        %v1291 = vunpack.c.l.bf16 %v1279
        %v1292 = vunpack.c.l.bf16 %v1280
        %v1293 = vunpack.c.l.bf16 %v1281
        %v1294 = vunpack.c.l.bf16 %v1282
        %v1295 = vunpack.c.l.bf16 %v1283
        %v1296 = vunpack.c.l.bf16 %v1284
        %v1297 = vunpack.c.l.bf16 %v1285
        %v1298 = vunpack.c.l.bf16 %v1286
        %v1299 = vunpack.c.l.bf16 %v1287
        %v1300 = vunpack.c.l.bf16 %v1288
        %v1301 = vlaneseq
        %v1302 = vshrl.u32 %v1301, 7
        %v1303 = vsub.s32 6, %v1302
        %v1304 = vrot.slane %v433, %v1303
        %v1305 = vmul.f32 %v1289, %v1304
        %v1306 = vmul.f32 %v1290, %v1304
        %v1307 = vmul.f32 %v1291, %v1304
        %v1308 = vmul.f32 %v1292, %v1304
        %v1309 = vmul.f32 %v1293, %v1304
        %v1310 = vmul.f32 %v1294, %v1304
        %v1311 = vmul.f32 %v1295, %v1304
        %v1312 = vmul.f32 %v1296, %v1304
        %v1313 = vmul.f32 %v1297, %v1304
        %v1314 = vmul.f32 %v1298, %v1304
        %v1315 = vmul.f32 %v1299, %v1304
        %v1316 = vmul.f32 %v1300, %v1304
        %v1317 = vadd.f32 %v1180, %v1305
        %v1318 = vadd.f32 %v1181, %v1306
        %v1319 = vadd.f32 %v1182, %v1307
        %v1320 = vadd.f32 %v1183, %v1308
        %v1321 = vadd.f32 %v1184, %v1309
        %v1322 = vadd.f32 %v1185, %v1310
        %v1323 = vadd.f32 %v1186, %v1311
        %v1324 = vadd.f32 %v1187, %v1312
        %v1325 = vadd.f32 %v1188, %v1313
        %v1326 = vadd.f32 %v1189, %v1314
        %v1327 = vadd.f32 %v1190, %v1315
        %v1328 = vadd.f32 %v1191, %v1316
        %v1329 = vlaneseq
        %v1330 = vshrl.u32 %v1329, 7
        %v1331 = vsub.s32 6, %v1330
        %v1332 = vrot.slane %v434, %v1331
        %v1333 = vmul.f32 %v1289, %v1332
        %v1334 = vmul.f32 %v1290, %v1332
        %v1335 = vmul.f32 %v1291, %v1332
        %v1336 = vmul.f32 %v1292, %v1332
        %v1337 = vmul.f32 %v1293, %v1332
        %v1338 = vmul.f32 %v1294, %v1332
        %v1339 = vmul.f32 %v1295, %v1332
        %v1340 = vmul.f32 %v1296, %v1332
        %v1341 = vmul.f32 %v1297, %v1332
        %v1342 = vmul.f32 %v1298, %v1332
        %v1343 = vmul.f32 %v1299, %v1332
        %v1344 = vmul.f32 %v1300, %v1332
        %v1345 = vadd.f32 %v1208, %v1333
        %v1346 = vadd.f32 %v1209, %v1334
        %v1347 = vadd.f32 %v1210, %v1335
        %v1348 = vadd.f32 %v1211, %v1336
        %v1349 = vadd.f32 %v1212, %v1337
        %v1350 = vadd.f32 %v1213, %v1338
        %v1351 = vadd.f32 %v1214, %v1339
        %v1352 = vadd.f32 %v1215, %v1340
        %v1353 = vadd.f32 %v1216, %v1341
        %v1354 = vadd.f32 %v1217, %v1342
        %v1355 = vadd.f32 %v1218, %v1343
        %v1356 = vadd.f32 %v1219, %v1344
        %v1357 = vlaneseq
        %v1358 = vshrl.u32 %v1357, 7
        %v1359 = vsub.s32 6, %v1358
        %v1360 = vrot.slane %v435, %v1359
        %v1361 = vmul.f32 %v1289, %v1360
        %v1362 = vmul.f32 %v1290, %v1360
        %v1363 = vmul.f32 %v1291, %v1360
        %v1364 = vmul.f32 %v1292, %v1360
        %v1365 = vmul.f32 %v1293, %v1360
        %v1366 = vmul.f32 %v1294, %v1360
        %v1367 = vmul.f32 %v1295, %v1360
        %v1368 = vmul.f32 %v1296, %v1360
        %v1369 = vmul.f32 %v1297, %v1360
        %v1370 = vmul.f32 %v1298, %v1360
        %v1371 = vmul.f32 %v1299, %v1360
        %v1372 = vmul.f32 %v1300, %v1360
        %v1373 = vadd.f32 %v1236, %v1361
        %v1374 = vadd.f32 %v1237, %v1362
        %v1375 = vadd.f32 %v1238, %v1363
        %v1376 = vadd.f32 %v1239, %v1364
        %v1377 = vadd.f32 %v1240, %v1365
        %v1378 = vadd.f32 %v1241, %v1366
        %v1379 = vadd.f32 %v1242, %v1367
        %v1380 = vadd.f32 %v1243, %v1368
        %v1381 = vadd.f32 %v1244, %v1369
        %v1382 = vadd.f32 %v1245, %v1370
        %v1383 = vadd.f32 %v1246, %v1371
        %v1384 = vadd.f32 %v1247, %v1372
        %v1385 = vlaneseq
        %v1386 = vshrl.u32 %v1385, 7
        %v1387 = vsub.s32 6, %v1386
        %v1388 = vrot.slane %v436, %v1387
        %v1389 = vmul.f32 %v1289, %v1388
        %v1390 = vmul.f32 %v1290, %v1388
        %v1391 = vmul.f32 %v1291, %v1388
        %v1392 = vmul.f32 %v1292, %v1388
        %v1393 = vmul.f32 %v1293, %v1388
        %v1394 = vmul.f32 %v1294, %v1388
        %v1395 = vmul.f32 %v1295, %v1388
        %v1396 = vmul.f32 %v1296, %v1388
        %v1397 = vmul.f32 %v1297, %v1388
        %v1398 = vmul.f32 %v1298, %v1388
        %v1399 = vmul.f32 %v1299, %v1388
        %v1400 = vmul.f32 %v1300, %v1388
        %v1401 = vadd.f32 %v1264, %v1389
        %v1402 = vadd.f32 %v1265, %v1390
        %v1403 = vadd.f32 %v1266, %v1391
        %v1404 = vadd.f32 %v1267, %v1392
        %v1405 = vadd.f32 %v1268, %v1393
        %v1406 = vadd.f32 %v1269, %v1394
        %v1407 = vadd.f32 %v1270, %v1395
        %v1408 = vadd.f32 %v1271, %v1396
        %v1409 = vadd.f32 %v1272, %v1397
        %v1410 = vadd.f32 %v1273, %v1398
        %v1411 = vadd.f32 %v1274, %v1399
        %v1412 = vadd.f32 %v1275, %v1400
        %s1413 = scalar_lea.vmem %s346, 336 [#allocation2]
        %v1414 = vld [vmem:[%s1413] sm:$0xf]
        %v1415 = vld [vmem:[%s1413 + $0x4] sm:$0xf]
        %v1416 = vld [vmem:[%s1413 + $0x8] sm:$0xf]
        %v1417 = vld [vmem:[%s1413 + $0xc] sm:$0xf]
        %v1418 = vld [vmem:[%s1413 + $0x10] sm:$0xf]
        %v1419 = vld [vmem:[%s1413 + $0x14] sm:$0xf]
        %v1420 = vld [vmem:[%s1413 + $0x18] sm:$0xf]
        %v1421 = vld [vmem:[%s1413 + $0x1c] sm:$0xf]
        %v1422 = vld [vmem:[%s1413 + $0x20] sm:$0xf]
        %v1423 = vld [vmem:[%s1413 + $0x24] sm:$0xf]
        %v1424 = vld [vmem:[%s1413 + $0x28] sm:$0xf]
        %v1425 = vld [vmem:[%s1413 + $0x2c] sm:$0xf]
        %v1426 = vunpack.c.l.bf16 %v1414
        %v1427 = vunpack.c.l.bf16 %v1415
        %v1428 = vunpack.c.l.bf16 %v1416
        %v1429 = vunpack.c.l.bf16 %v1417
        %v1430 = vunpack.c.l.bf16 %v1418
        %v1431 = vunpack.c.l.bf16 %v1419
        %v1432 = vunpack.c.l.bf16 %v1420
        %v1433 = vunpack.c.l.bf16 %v1421
        %v1434 = vunpack.c.l.bf16 %v1422
        %v1435 = vunpack.c.l.bf16 %v1423
        %v1436 = vunpack.c.l.bf16 %v1424
        %v1437 = vunpack.c.l.bf16 %v1425
        %v1438 = vlaneseq
        %v1439 = vshrl.u32 %v1438, 7
        %v1440 = vsub.s32 7, %v1439
        %v1441 = vrot.slane %v433, %v1440
        %v1442 = vmul.f32 %v1426, %v1441
        %v1443 = vmul.f32 %v1427, %v1441
        %v1444 = vmul.f32 %v1428, %v1441
        %v1445 = vmul.f32 %v1429, %v1441
        %v1446 = vmul.f32 %v1430, %v1441
        %v1447 = vmul.f32 %v1431, %v1441
        %v1448 = vmul.f32 %v1432, %v1441
        %v1449 = vmul.f32 %v1433, %v1441
        %v1450 = vmul.f32 %v1434, %v1441
        %v1451 = vmul.f32 %v1435, %v1441
        %v1452 = vmul.f32 %v1436, %v1441
        %v1453 = vmul.f32 %v1437, %v1441
        %v1454 = vadd.f32 %v1317, %v1442
        %v1455 = vadd.f32 %v1318, %v1443
        %v1456 = vadd.f32 %v1319, %v1444
        %v1457 = vadd.f32 %v1320, %v1445
        %v1458 = vadd.f32 %v1321, %v1446
        %v1459 = vadd.f32 %v1322, %v1447
        %v1460 = vadd.f32 %v1323, %v1448
        %v1461 = vadd.f32 %v1324, %v1449
        %v1462 = vadd.f32 %v1325, %v1450
        %v1463 = vadd.f32 %v1326, %v1451
        %v1464 = vadd.f32 %v1327, %v1452
        %v1465 = vadd.f32 %v1328, %v1453
        %v1466 = vlaneseq
        %v1467 = vshrl.u32 %v1466, 7
        %v1468 = vsub.s32 7, %v1467
        %v1469 = vrot.slane %v434, %v1468
        %v1470 = vmul.f32 %v1426, %v1469
        %v1471 = vmul.f32 %v1427, %v1469
        %v1472 = vmul.f32 %v1428, %v1469
        %v1473 = vmul.f32 %v1429, %v1469
        %v1474 = vmul.f32 %v1430, %v1469
        %v1475 = vmul.f32 %v1431, %v1469
        %v1476 = vmul.f32 %v1432, %v1469
        %v1477 = vmul.f32 %v1433, %v1469
        %v1478 = vmul.f32 %v1434, %v1469
        %v1479 = vmul.f32 %v1435, %v1469
        %v1480 = vmul.f32 %v1436, %v1469
        %v1481 = vmul.f32 %v1437, %v1469
        %v1482 = vadd.f32 %v1345, %v1470
        %v1483 = vadd.f32 %v1346, %v1471
        %v1484 = vadd.f32 %v1347, %v1472
        %v1485 = vadd.f32 %v1348, %v1473
        %v1486 = vadd.f32 %v1349, %v1474
        %v1487 = vadd.f32 %v1350, %v1475
        %v1488 = vadd.f32 %v1351, %v1476
        %v1489 = vadd.f32 %v1352, %v1477
        %v1490 = vadd.f32 %v1353, %v1478
        %v1491 = vadd.f32 %v1354, %v1479
        %v1492 = vadd.f32 %v1355, %v1480
        %v1493 = vadd.f32 %v1356, %v1481
        %v1494 = vlaneseq
        %v1495 = vshrl.u32 %v1494, 7
        %v1496 = vsub.s32 7, %v1495
        %v1497 = vrot.slane %v435, %v1496
        %v1498 = vmul.f32 %v1426, %v1497
        %v1499 = vmul.f32 %v1427, %v1497
        %v1500 = vmul.f32 %v1428, %v1497
        %v1501 = vmul.f32 %v1429, %v1497
        %v1502 = vmul.f32 %v1430, %v1497
        %v1503 = vmul.f32 %v1431, %v1497
        %v1504 = vmul.f32 %v1432, %v1497
        %v1505 = vmul.f32 %v1433, %v1497
        %v1506 = vmul.f32 %v1434, %v1497
        %v1507 = vmul.f32 %v1435, %v1497
        %v1508 = vmul.f32 %v1436, %v1497
        %v1509 = vmul.f32 %v1437, %v1497
        %v1510 = vadd.f32 %v1373, %v1498
        %v1511 = vadd.f32 %v1374, %v1499
        %v1512 = vadd.f32 %v1375, %v1500
        %v1513 = vadd.f32 %v1376, %v1501
        %v1514 = vadd.f32 %v1377, %v1502
        %v1515 = vadd.f32 %v1378, %v1503
        %v1516 = vadd.f32 %v1379, %v1504
        %v1517 = vadd.f32 %v1380, %v1505
        %v1518 = vadd.f32 %v1381, %v1506
        %v1519 = vadd.f32 %v1382, %v1507
        %v1520 = vadd.f32 %v1383, %v1508
        %v1521 = vadd.f32 %v1384, %v1509
        %v1522 = vlaneseq
        %v1523 = vshrl.u32 %v1522, 7
        %v1524 = vsub.s32 7, %v1523
        %v1525 = vrot.slane %v436, %v1524
        %v1526 = vmul.f32 %v1426, %v1525
        %v1527 = vmul.f32 %v1427, %v1525
        %v1528 = vmul.f32 %v1428, %v1525
        %v1529 = vmul.f32 %v1429, %v1525
        %v1530 = vmul.f32 %v1430, %v1525
        %v1531 = vmul.f32 %v1431, %v1525
        %v1532 = vmul.f32 %v1432, %v1525
        %v1533 = vmul.f32 %v1433, %v1525
        %v1534 = vmul.f32 %v1434, %v1525
        %v1535 = vmul.f32 %v1435, %v1525
        %v1536 = vmul.f32 %v1436, %v1525
        %v1537 = vmul.f32 %v1437, %v1525
        %v1538 = vadd.f32 %v1401, %v1526
        %v1539 = vadd.f32 %v1402, %v1527
        %v1540 = vadd.f32 %v1403, %v1528
        %v1541 = vadd.f32 %v1404, %v1529
        %v1542 = vadd.f32 %v1405, %v1530
        %v1543 = vadd.f32 %v1406, %v1531
        %v1544 = vadd.f32 %v1407, %v1532
        %v1545 = vadd.f32 %v1408, %v1533
        %v1546 = vadd.f32 %v1409, %v1534
        %v1547 = vadd.f32 %v1410, %v1535
        %v1548 = vadd.f32 %v1411, %v1536
        %v1549 = vadd.f32 %v1412, %v1537
        %v1550 = vld [vmem:[%s381] sm:$0x1]
        %v1551 = vmax.f32 %v1454, 0.0
        %v1552 = vmax.f32 %v1455, 0.0
        %v1553 = vmax.f32 %v1456, 0.0
        %v1554 = vmax.f32 %v1457, 0.0
        %v1555 = vmax.f32 %v1458, 0.0
        %v1556 = vmax.f32 %v1459, 0.0
        %v1557 = vmax.f32 %v1460, 0.0
        %v1558 = vmax.f32 %v1461, 0.0
        %v1559 = vmax.f32 %v1462, 0.0
        %v1560 = vmax.f32 %v1463, 0.0
        %v1561 = vmax.f32 %v1464, 0.0
        %v1562 = vmax.f32 %v1465, 0.0
        %v1563 = vlaneseq
        %v1564 = vshrl.u32 %v1563, 7
        %v1565 = vsub.s32 0, %v1564
        %v1566 = vrot.slane %v438, %v1565
        %v1567 = vmul.f32 %v1551, %v1566
        %v1568 = vmul.f32 %v1552, %v1566
        %v1569 = vmul.f32 %v1553, %v1566
        %v1570 = vmul.f32 %v1554, %v1566
        %v1571 = vmul.f32 %v1555, %v1566
        %v1572 = vmul.f32 %v1556, %v1566
        %v1573 = vmul.f32 %v1557, %v1566
        %v1574 = vmul.f32 %v1558, %v1566
        %v1575 = vmul.f32 %v1559, %v1566
        %v1576 = vmul.f32 %v1560, %v1566
        %v1577 = vmul.f32 %v1561, %v1566
        %v1578 = vmul.f32 %v1562, %v1566
        %v1580 = vlaneseq
        %v1581 = vshrl.u32 %v1580, 7
        %v1582 = vsub.s32 0, %v1581
        %v1583 = vrot.slane %v1550, %v1582
        %v1585 = vadd.f32 %v1583, %v1567
        %v1586 = vadd.f32 %v1583, %v1568
        %v1587 = vadd.f32 %v1583, %v1569
        %v1588 = vadd.f32 %v1583, %v1570
        %v1589 = vadd.f32 %v1583, %v1571
        %v1590 = vadd.f32 %v1583, %v1572
        %v1591 = vadd.f32 %v1583, %v1573
        %v1592 = vadd.f32 %v1583, %v1574
        %v1593 = vadd.f32 %v1583, %v1575
        %v1594 = vadd.f32 %v1583, %v1576
        %v1595 = vadd.f32 %v1583, %v1577
        %v1596 = vadd.f32 %v1583, %v1578
        %v1597 = vmax.f32 %v1482, 0.0
        %v1598 = vmax.f32 %v1483, 0.0
        %v1599 = vmax.f32 %v1484, 0.0
        %v1600 = vmax.f32 %v1485, 0.0
        %v1601 = vmax.f32 %v1486, 0.0
        %v1602 = vmax.f32 %v1487, 0.0
        %v1603 = vmax.f32 %v1488, 0.0
        %v1604 = vmax.f32 %v1489, 0.0
        %v1605 = vmax.f32 %v1490, 0.0
        %v1606 = vmax.f32 %v1491, 0.0
        %v1607 = vmax.f32 %v1492, 0.0
        %v1608 = vmax.f32 %v1493, 0.0
        %v1609 = vlaneseq
        %v1610 = vshrl.u32 %v1609, 7
        %v1611 = vsub.s32 1, %v1610
        %v1612 = vrot.slane %v438, %v1611
        %v1613 = vmul.f32 %v1597, %v1612
        %v1614 = vmul.f32 %v1598, %v1612
        %v1615 = vmul.f32 %v1599, %v1612
        %v1616 = vmul.f32 %v1600, %v1612
        %v1617 = vmul.f32 %v1601, %v1612
        %v1618 = vmul.f32 %v1602, %v1612
        %v1619 = vmul.f32 %v1603, %v1612
        %v1620 = vmul.f32 %v1604, %v1612
        %v1621 = vmul.f32 %v1605, %v1612
        %v1622 = vmul.f32 %v1606, %v1612
        %v1623 = vmul.f32 %v1607, %v1612
        %v1624 = vmul.f32 %v1608, %v1612
        %v1625 = vadd.f32 %v1585, %v1613
        %v1626 = vadd.f32 %v1586, %v1614
        %v1627 = vadd.f32 %v1587, %v1615
        %v1628 = vadd.f32 %v1588, %v1616
        %v1629 = vadd.f32 %v1589, %v1617
        %v1630 = vadd.f32 %v1590, %v1618
        %v1631 = vadd.f32 %v1591, %v1619
        %v1632 = vadd.f32 %v1592, %v1620
        %v1633 = vadd.f32 %v1593, %v1621
        %v1634 = vadd.f32 %v1594, %v1622
        %v1635 = vadd.f32 %v1595, %v1623
        %v1636 = vadd.f32 %v1596, %v1624
        %v1637 = vmax.f32 %v1510, 0.0
        %v1638 = vmax.f32 %v1511, 0.0
        %v1639 = vmax.f32 %v1512, 0.0
        %v1640 = vmax.f32 %v1513, 0.0
        %v1641 = vmax.f32 %v1514, 0.0
        %v1642 = vmax.f32 %v1515, 0.0
        %v1643 = vmax.f32 %v1516, 0.0
        %v1644 = vmax.f32 %v1517, 0.0
        %v1645 = vmax.f32 %v1518, 0.0
        %v1646 = vmax.f32 %v1519, 0.0
        %v1647 = vmax.f32 %v1520, 0.0
        %v1648 = vmax.f32 %v1521, 0.0
        %v1649 = vlaneseq
        %v1650 = vshrl.u32 %v1649, 7
        %v1651 = vsub.s32 2, %v1650
        %v1652 = vrot.slane %v438, %v1651
        %v1653 = vmul.f32 %v1637, %v1652
        %v1654 = vmul.f32 %v1638, %v1652
        %v1655 = vmul.f32 %v1639, %v1652
        %v1656 = vmul.f32 %v1640, %v1652
        %v1657 = vmul.f32 %v1641, %v1652
        %v1658 = vmul.f32 %v1642, %v1652
        %v1659 = vmul.f32 %v1643, %v1652
        %v1660 = vmul.f32 %v1644, %v1652
        %v1661 = vmul.f32 %v1645, %v1652
        %v1662 = vmul.f32 %v1646, %v1652
        %v1663 = vmul.f32 %v1647, %v1652
        %v1664 = vmul.f32 %v1648, %v1652
        %v1665 = vadd.f32 %v1625, %v1653
        %v1666 = vadd.f32 %v1626, %v1654
        %v1667 = vadd.f32 %v1627, %v1655
        %v1668 = vadd.f32 %v1628, %v1656
        %v1669 = vadd.f32 %v1629, %v1657
        %v1670 = vadd.f32 %v1630, %v1658
        %v1671 = vadd.f32 %v1631, %v1659
        %v1672 = vadd.f32 %v1632, %v1660
        %v1673 = vadd.f32 %v1633, %v1661
        %v1674 = vadd.f32 %v1634, %v1662
        %v1675 = vadd.f32 %v1635, %v1663
        %v1676 = vadd.f32 %v1636, %v1664
        %v1677 = vmax.f32 %v1538, 0.0
        %v1678 = vmax.f32 %v1539, 0.0
        %v1679 = vmax.f32 %v1540, 0.0
        %v1680 = vmax.f32 %v1541, 0.0
        %v1681 = vmax.f32 %v1542, 0.0
        %v1682 = vmax.f32 %v1543, 0.0
        %v1683 = vmax.f32 %v1544, 0.0
        %v1684 = vmax.f32 %v1545, 0.0
        %v1685 = vmax.f32 %v1546, 0.0
        %v1686 = vmax.f32 %v1547, 0.0
        %v1687 = vmax.f32 %v1548, 0.0
        %v1688 = vmax.f32 %v1549, 0.0
        %v1689 = vlaneseq
        %v1690 = vshrl.u32 %v1689, 7
        %v1691 = vsub.s32 3, %v1690
        %v1692 = vrot.slane %v438, %v1691
        %v1693 = vmul.f32 %v1677, %v1692
        %v1694 = vmul.f32 %v1678, %v1692
        %v1695 = vmul.f32 %v1679, %v1692
        %v1696 = vmul.f32 %v1680, %v1692
        %v1697 = vmul.f32 %v1681, %v1692
        %v1698 = vmul.f32 %v1682, %v1692
        %v1699 = vmul.f32 %v1683, %v1692
        %v1700 = vmul.f32 %v1684, %v1692
        %v1701 = vmul.f32 %v1685, %v1692
        %v1702 = vmul.f32 %v1686, %v1692
        %v1703 = vmul.f32 %v1687, %v1692
        %v1704 = vmul.f32 %v1688, %v1692
        %v1705 = vadd.f32 %v1665, %v1693
        %v1706 = vadd.f32 %v1666, %v1694
        %v1707 = vadd.f32 %v1667, %v1695
        %v1708 = vadd.f32 %v1668, %v1696
        %v1709 = vadd.f32 %v1669, %v1697
        %v1710 = vadd.f32 %v1670, %v1698
        %v1711 = vadd.f32 %v1671, %v1699
        %v1712 = vadd.f32 %v1672, %v1700
        %v1713 = vadd.f32 %v1673, %v1701
        %v1714 = vadd.f32 %v1674, %v1702
        %v1715 = vadd.f32 %v1675, %v1703
        %v1716 = vadd.f32 %v1676, %v1704
        %1717 = vst [vmem:[%s426] sm:$0xff] %v1705
        %1718 = vst [vmem:[%s426 + $0x8] sm:$0xff] %v1706
        %1719 = vst [vmem:[%s426 + $0x10] sm:$0xff] %v1707
        %1720 = vst [vmem:[%s426 + $0x18] sm:$0xff] %v1708
        %1721 = vst [vmem:[%s426 + $0x20] sm:$0xff] %v1709
        %1722 = vst [vmem:[%s426 + $0x28] sm:$0xff] %v1710
        %1723 = vst [vmem:[%s426 + $0x30] sm:$0xff] %v1711
        %1724 = vst [vmem:[%s426 + $0x38] sm:$0xff] %v1712
        %1725 = vst [vmem:[%s426 + $0x40] sm:$0xff] %v1713
        %1726 = vst [vmem:[%s426 + $0x48] sm:$0xff] %v1714
        %1727 = vst [vmem:[%s426 + $0x50] sm:$0xff] %v1715
        %1728 = vst [vmem:[%s426 + $0x58] sm:$0xff] %v1716
        %s1729 = sand.u32 %s182, 1
        %s1730 = scalar_lea.sflag [#allocation4], %s1729
        %s1731 = sand.u32 %s182, 1
        %s1732 = smul.addr %s1731, 96
        %s1733 = scalar_lea.vmem [#allocation11], %s1732
        // Predicated region
        $region61: #{tpu_custom_call.1} parent=39 // pred_check
          %p1734 = pneg %p192
        $region62: #{tpu_custom_call.1} parent=39 // pred_check_branch
          %1736 = sbr.rel (%p1734) target = $region64
        $region63: #{tpu_custom_call.1} parent=39 // pred_region
          %s1737 = smul.u32 12, %s33
          %s1739 = ssub.s32 1536, 1536
          %1740 = vsyncadd %s1730, %s1739
          %s1741 = smul.addr %s1737, 5
          %s1742 = sadd.s32 %s32, %s1741
          %s1743 = smul.addr %s1742, 128
          %s1744 = scalar_lea.hbm %s5, %s1743
          %s1745 = sshll.u32 %s1733, 4
          %s1746 = int_to_ptr.vmem [resolvable:$true] %s1745
          %1751 = dma.vmem_to_hbm [thread:$0]  %s1746, 1536, %s1744, %s1730, 128, 640, 8
        $region64: #{tpu_custom_call.1} parent=39 // pred_fallthru
          _
      $region40: #{tpu_custom_call.1} parent=5 // pred_fallthru
        _
      %p1752 = scmp.le.s32.totalorder 2, %s23
      // Predicated region
      $region65: #{tpu_custom_call.1} parent=5 // pred_check
        %p1753 = pneg %p1752
      $region66: #{tpu_custom_call.1} parent=5 // pred_check_branch
        %1755 = sbr.rel (%p1753) target = $region68
      $region67: #{tpu_custom_call.1} parent=5 // pred_region
        %s1756 = ssub.s32 %s23, 2
        // Predicated region
        $region69: #{tpu_custom_call.1} parent=67 // pred_check
          %p1757 = pneg %p198
        $region70: #{tpu_custom_call.1} parent=67 // pred_check_branch
          %1759 = sbr.rel (%p1757) target = $region72
        $region71: #{tpu_custom_call.1} parent=67 // pred_region
          %s1760 = sand.u32 %s183, 1
          %s1761 = scalar_lea.sflag [#allocation4], %s1760
          %s1762 = sand.u32 %s183, 1
          %s1763 = smul.addr %s1762, 96
          %s1764 = scalar_lea.vmem [#allocation11], %s1763
          %1765 = dma.done %s1761, 1536
        $region72: #{tpu_custom_call.1} parent=67 // pred_fallthru
          _
      $region68: #{tpu_custom_call.1} parent=5 // pred_fallthru
        _
    $region6: #{tpu_custom_call.1} parent=1 // loop_footer
      %s27 = sadd.s32 1, %s23
    $region7: #{tpu_custom_call.1} parent=1 // loop_footer_branch
      %22 = sbr.rel target = $region3
    $region8: #{tpu_custom_call.1} parent=1 // loop_exit
      _
    %1766 = vsyncpa [#allocation3], 1
    %s1767 = scalar_lea.sflag [#allocation3], 1
    %1768 = vsyncpa %s1767, 1
    %1769 = vsyncpa [#allocation6], 1
    %s1770 = scalar_lea.sflag [#allocation6], 1
    %1771 = vsyncpa %s1770, 1
    %1772 = vsyncpa [#allocation9], 1
    %s1773 = scalar_lea.sflag [#allocation9], 1
    %1774 = vsyncpa %s1773, 1
    %1775 = vsyncpa [#allocation4], 1
    %s1776 = scalar_lea.sflag [#allocation4], 1
    %1777 = vsyncpa %s1776, 1

</llo_original>
